<compile_context>
chip_gen: v5e
topology: v5e:2x2
jax: 0.10.0
libtpu: 0.0.40
codegen_flags: <defaults>
</compile_context>

<pallas_src>
import functools

import numpy as np
import jax
import jax.numpy as jnp
from jax.experimental import pallas as pl
from jax.experimental.pallas import tpu as pltpu

# ---------------------------- problem sizes ---------------------------------
B = 2                       # batch
CIN = 4                     # input image channels
H = W = 32                  # input spatial size
L = 8                       # text sequence length
CT = 32                     # text hidden dim
C1, C2, C3, C4 = 8, 16, 32, 32   # backbone stage channels (strides 2,4,8,16)
CD = 32                     # decoder hidden dim
NUM_CLASSES = 2

_COFF = (0, C1, C1 + C2, C1 + C2 + C3, C1 + C2 + C3 + C4)   # 0, 8, 24, 56, 88


# ---------------------------- fused kernel ----------------------------------

def _make_kernel(nb, lay32, lay64, hw1):
    """Build the fused kernel. `nb` = batch elements handled per grid step."""

    def kernel(x_ref, lf_ref, lm_ref, ct_ref, s32_ref, s64_ref, up2_ref, out_ref):
        def gref(width, name, r0=None, r1=None):
            ref, lay = (s32_ref, lay32) if width == 32 else (s64_ref, lay64)
            off, r, c = lay[name]
            if r0 is None:
                r0, r1 = 0, r
            return ref[off + r0: off + r1, :c]           # static slice -> plain load

        def mm(a, b):
            return jnp.dot(a, b, preferred_element_type=jnp.float32)

        for bi in range(nb):                              # static loop (nb <= B)
            # ---- masked mean-pool of language features over the sequence -> (CT, 1)
            lf = lf_ref[bi]                               # (CT, L)
            lm = lm_ref[bi]                               # (1, L)
            den = jnp.maximum(jnp.sum(lm, axis=1, keepdims=True), 1.0)
            l_pool = jnp.sum(lf * lm, axis=1, keepdims=True) / den       # (CT, 1)

            # ---- all four language gates with one stacked matvec + one sigmoid
            gate_all = jax.nn.sigmoid(
                mm(gref(32, "gate_w_all"), l_pool) + gref(32, "gate_b_all"))  # (88, 1)

            # ---- backbone: {2x2 avg-pool -> 1x1 conv -> ReLU -> language gate} x4
            # (the stage-1 avg-pool was hoisted to the wrapper)
            cur = x_ref[bi]                               # (CIN, 256)
            feats = []
            for s in range(4):
                if s == 1:
                    cur = mm(cur, gref(64, "pool1_t"))    # (*, 256) -> (*, 64)
                elif s == 2:
                    cur = mm(cur, gref(32, "pool2_t"))    # (*, 64)  -> (*, 16)
                elif s == 3:
                    cur = mm(cur, gref(32, "pool3_t"))    # (*, 16)  -> (*, 4)
                y = mm(gref(32, f"bb_w{s}"), cur) \
                    + gref(32, "bb_b_all", _COFF[s], _COFF[s + 1])
                y = jnp.maximum(y, 0.0) * gate_all[_COFF[s]:_COFF[s + 1], :]
                feats.append(y)
                cur = y
            x_c1, x_c2, x_c3, x_c4 = feats

            # ---- decoder: y = relu((Wu @ y) @ U + Wl @ lateral + b), 3 levels
            # (reassociated: channel mix at the small spatial size, then upsample)
            lats = (x_c3, x_c2, x_c1)
            y = x_c4
            for l in range(3):
                if l == 0:
                    u = gref(32, "up0_t")                 # (4, 16)
                elif l == 1:
                    u = gref(64, "up1_t")                 # (16, 64)
                else:
                    u = up2_ref[...]                      # (64, 256)
                y = mm(mm(gref(32, f"dec_wu{l}"), y), u) \
                    + mm(gref(32, f"dec_wl{l}"), lats[l]) + gref(32, f"dec_b{l}")
                y = jnp.maximum(y, 0.0)                   # (CD, hw_l)

            logits = mm(gref(32, "cls_w"), y) + gref(32, "cls_b")   # (NUM_CLASSES, 256)

            # ---- re_loss difference vector, packed into the aux output row
            v = jnp.mean(y, axis=1, keepdims=True)                        # (CD, 1)
            v_proj = jnp.sum(gref(32, "re_v_w") * v, axis=0, keepdims=True) \
                + gref(32, "re_v_b")                                      # (1, CT)
            t_proj = jnp.sum(gref(32, "re_t_w") * ct_ref[bi], axis=0, keepdims=True) \
                + gref(32, "re_t_b")                                      # (1, CT)
            d = v_proj - t_proj                                           # (1, CT)

            out_ref[bi, 0:NUM_CLASSES, :] = logits
            out_ref[bi, NUM_CLASSES:NUM_CLASSES + 1, :] = jnp.zeros((1, hw1), jnp.float32)
            out_ref[bi, NUM_CLASSES:NUM_CLASSES + 1, 0:CT] = d

    return kernel


# ---------------------------- wrapper ----------------------------------------

def _batch_per_step(batch):
    """Batch elements per grid step. Collapse the grid to one step on single-TC
    chips (v5e/v6e); keep one element per step elsewhere (v7x: one per core)."""
    try:
        kind = jax.devices()[0].device_kind.lower()
    except Exception:
        return 1
    single_tc = any(t in kind for t in ("v5 lite", "v5e", "v6 lite", "v6e"))
    return batch if single_tc else 1


def _batched_spec(shape, nb):
    nd = len(shape)
    return pl.BlockSpec((nb,) + tuple(shape[1:]),
                        lambda g, _nd=nd: (g,) + (0,) * (_nd - 1))


def _shared_spec(shape):
    nd = len(shape)
    return pl.BlockSpec(tuple(shape), lambda g, _nd=nd: (0,) * _nd)


def lavt_simple_decode(params, layouts, x_nchw, l_feats, class_token, l_mask):
    """x:(B,Cin,H,W), l_feats:(B,Ct,L), class_token:(B,Ct), l_mask:(B,L,1)."""
    Bb, Cin, Hh, Ww = x_nchw.shape
    h1, w1 = Hh // 2, Ww // 2
    hw1 = h1 * w1

    # Stage-1 2x2 avg-pool hoisted out of the kernel (removes the 1 MiB pool0
    # Kronecker operand and its M=4 matmul).
    x1 = x_nchw.reshape(Bb, Cin, h1, 2, w1, 2).mean(axis=(3, 5)).reshape(Bb, Cin, hw1)

    lf = l_feats                              # (B, CT, L) natural orientation
    lm = jnp.transpose(l_mask, (0, 2, 1))     # (B, 1, L)
    ct = class_token[:, :, None]              # (B, CT, 1)

    nb = _batch_per_step(Bb)
    grid = (Bb // nb,)

    batched = (x1, lf, lm, ct)
    shared = (params["slab32"], params["slab64"], params["up2_t"])

    in_specs = ([_batched_spec(a.shape, nb) for a in batched]
                + [_shared_spec(a.shape) for a in shared])
    out_specs = pl.BlockSpec((nb, NUM_CLASSES + 1, hw1), lambda g: (g, 0, 0))
    out_shape = jax.ShapeDtypeStruct((Bb, NUM_CLASSES + 1, hw1), jnp.float32)

    kernel = _make_kernel(nb, layouts["s32"], layouts["s64"], hw1)
    out_full = pl.pallas_call(
        kernel,
        grid=grid,
        in_specs=in_specs,
        out_specs=out_specs,
        out_shape=out_shape,
        compiler_params=pltpu.CompilerParams(dimension_semantics=("parallel",)),
    )(*batched, *shared)

    logits = out_full[:, :NUM_CLASSES, :].reshape(Bb, NUM_CLASSES, h1, w1)
    d = out_full[:, NUM_CLASSES, :CT]             # (B, CT) alignment differences
    re_loss = jnp.mean(d * d)                     # MSE over (B, CT)

    # F.interpolate(size=input_shape, mode='bilinear', align_corners=True) as two
    # tiny separable 1-D operators (exact equivalent of the Kronecker matmul).
    Ah = params["up_final_h"]                     # (H, H//2)
    Aw = params["up_final_w"]                     # (W, W//2)
    up_h = jnp.einsum('oh,bchw->bcow', Ah, logits)
    out = jnp.einsum('pw,bcow->bcop', Aw, up_h)   # (B, NUM_CLASSES, H, W)
    return out, re_loss


# ---------------------------- parameters / constants -------------------------

def _bilinear_matrix(n_out, n_in):
    """1-D operator matching F.interpolate(mode='bilinear', align_corners=True)."""
    A = np.zeros((n_out, n_in), np.float32)
    for i in range(n_out):
        src = 0.0 if n_out == 1 else i * (n_in - 1) / (n_out - 1)
        f0 = min(int(np.floor(src)), n_in - 1)
        f1 = min(f0 + 1, n_in - 1)
        w = src - f0
        A[i, f0] += 1.0 - w
        A[i, f1] += w
    return A


def _avgpool_matrix(n_in):
    """1-D 2x / stride-2 average-pool operator."""
    n_out = n_in // 2
    P = np.zeros((n_out, n_in), np.float32)
    for i in range(n_out):
        P[i, 2 * i] = 0.5
        P[i, 2 * i + 1] = 0.5
    return P


def _spatial_op_t(op_1d):
    """Separable 2-D operator on row-major flattened (h, w), transposed so it
    right-multiplies a (C, HW_in) activation: returns (HW_in, HW_out)."""
    return np.kron(op_1d, op_1d).T.astype(np.float32)


def _pack_slab(entries, width):
    """Pack [(name, (r, c) array)] with c <= width into one (R, width) slab,
    8-row-aligned entries. Returns (slab, layout{name: (row_off, r, c)})."""
    layout, blocks, off = {}, [], 0
    for name, a in entries:
        a = np.asarray(a, np.float32)
        r, c = a.shape
        rp = ((r + 7) // 8) * 8
        blk = np.zeros((rp, width), np.float32)
        blk[:r, :c] = a
        blocks.append(blk)
        layout[name] = (off, r, c)
        off += rp
    return jnp.asarray(np.concatenate(blocks, axis=0)), layout


def _init_params(key):
    ks = jax.random.split(key, 17)

    def nrm(k, shape, scale=0.1):
        return np.asarray(jax.random.normal(k, shape, dtype=jnp.float32)) * scale

    dims = [CIN, C1, C2, C3, C4]
    raw = {}
    for s in range(4):
        raw[f"bb_w{s}"] = nrm(ks[s], (dims[s + 1], dims[s]))     # 1x1 conv (Cout, Cin)
        raw[f"gate_w{s}"] = nrm(ks[4 + s], (dims[s + 1], CT))    # language gate
    raw["dec_wu0"] = nrm(ks[8], (CD, C4));  raw["dec_wl0"] = nrm(ks[9], (CD, C3))
    raw["dec_wu1"] = nrm(ks[10], (CD, CD)); raw["dec_wl1"] = nrm(ks[11], (CD, C2))
    raw["dec_wu2"] = nrm(ks[12], (CD, CD)); raw["dec_wl2"] = nrm(ks[13], (CD, C1))
    raw["cls_w"] = nrm(ks[14], (NUM_CLASSES, CD))
    raw["re_v_w"] = nrm(ks[15], (CD, CT))
    raw["re_t_w"] = nrm(ks[16], (CT, CT))

    ctot = C1 + C2 + C3 + C4
    gate_w_all = np.concatenate([raw[f"gate_w{s}"] for s in range(4)], axis=0)  # (88, CT)

    # structural spatial-resampling constants (avg-pool + align_corners bilinear)
    sizes = [H, H // 2, H // 4, H // 8, H // 16]                 # 32, 16, 8, 4, 2
    pool1_t = _spatial_op_t(_avgpool_matrix(sizes[1]))           # (256, 64)
    pool2_t = _spatial_op_t(_avgpool_matrix(sizes[2]))           # (64, 16)
    pool3_t = _spatial_op_t(_avgpool_matrix(sizes[3]))           # (16, 4)
    up0_t = _spatial_op_t(_bilinear_matrix(sizes[3], sizes[4]))  # (4, 16)
    up1_t = _spatial_op_t(_bilinear_matrix(sizes[2], sizes[3]))  # (16, 64)
    up2_t = _spatial_op_t(_bilinear_matrix(sizes[1], sizes[2]))  # (64, 256)

    zcol = lambda n: np.zeros((n, 1), np.float32)
    zrow = lambda n: np.zeros((1, n), np.float32)

    s32_entries = [
        ("pool2_t", pool2_t), ("pool3_t", pool3_t), ("up0_t", up0_t),
        ("bb_w0", raw["bb_w0"]), ("bb_w1", raw["bb_w1"]),
        ("bb_w2", raw["bb_w2"]), ("bb_w3", raw["bb_w3"]),
        ("bb_b_all", zcol(ctot)),
        ("gate_w_all", gate_w_all), ("gate_b_all", zcol(ctot)),
        ("dec_wu0", raw["dec_wu0"]), ("dec_wl0", raw["dec_wl0"]), ("dec_b0", zcol(CD)),
        ("dec_wu1", raw["dec_wu1"]), ("dec_wl1", raw["dec_wl1"]), ("dec_b1", zcol(CD)),
        ("dec_wu2", raw["dec_wu2"]), ("dec_wl2", raw["dec_wl2"]), ("dec_b2", zcol(CD)),
        ("cls_w", raw["cls_w"]), ("cls_b", zcol(NUM_CLASSES)),
        ("re_v_w", raw["re_v_w"]), ("re_v_b", zrow(CT)),
        ("re_t_w", raw["re_t_w"]), ("re_t_b", zrow(CT)),
    ]
    s64_entries = [("pool1_t", pool1_t), ("up1_t", up1_t)]

    slab32, lay32 = _pack_slab(s32_entries, 32)
    slab64, lay64 = _pack_slab(s64_entries, 64)

    params = {
        "slab32": slab32,
        "slab64": slab64,
        "up2_t": jnp.asarray(up2_t),
        "up_final_h": jnp.asarray(_bilinear_matrix(H, H // 2)),
        "up_final_w": jnp.asarray(_bilinear_matrix(W, W // 2)),
    }
    layouts = {"s32": lay32, "s64": lay64}
    return params, layouts


# ---------------------------- main --------------------------------------------

if __name__ == "__main__":
    key = jax.random.PRNGKey(0)
    kx, kl, kc, kp = jax.random.split(key, 4)
    x = jax.random.normal(kx, (B, CIN, H, W), dtype=jnp.float32)
    l_feats = jax.random.normal(kl, (B, CT, L), dtype=jnp.float32)
    class_token = jax.random.normal(kc, (B, CT), dtype=jnp.float32)
    lens = jnp.array([5, L])
    l_mask = (jnp.arange(L)[None, :] < lens[:, None]).astype(jnp.float32)[..., None]

    params, layouts = _init_params(kp)
    fwd = jax.jit(functools.partial(lavt_simple_decode, params, layouts))
    out, re_loss = fwd(x, l_feats, class_token, l_mask)
    jax.block_until_ready((out, re_loss))

    assert out.shape == (B, NUM_CLASSES, H, W), out.shape
    assert re_loss.shape == (), re_loss.shape
    assert bool(jnp.all(jnp.isfinite(out))) and bool(jnp.isfinite(re_loss))
    print("KERNEL_OK")
</pallas_src>

<mosaic_0001>
module attributes {stable_mosaic.version = 11 : i64} {
  func.func @kernel(%arg0: i32, %arg1: memref<1x4x256xf32, #tpu.memory_space<vmem>>, %arg2: memref<1x32x8xf32, #tpu.memory_space<vmem>>, %arg3: memref<1x1x8xf32, #tpu.memory_space<vmem>>, %arg4: memref<1x32x1xf32, #tpu.memory_space<vmem>>, %arg5: memref<824x32xf32, #tpu.memory_space<vmem>>, %arg6: memref<272x64xf32, #tpu.memory_space<vmem>>, %arg7: memref<64x256xf32, #tpu.memory_space<vmem>>, %arg8: memref<1x3x256xf32, #tpu.memory_space<vmem>>) attributes {dimension_semantics = [#tpu.dimension_semantics<parallel>], iteration_bounds = array<i64: 2>, scalar_prefetch = 0 : i64, scratch_operands = 0 : i64, tpu.core_type = #tpu.core_type<tc>, window_params = [{transform_indices = @transform_0, window_bounds = array<i64: 1, 4, 256>}, {transform_indices = @transform_1, window_bounds = array<i64: 1, 32, 8>}, {transform_indices = @transform_2, window_bounds = array<i64: 1, 1, 8>}, {transform_indices = @transform_3, window_bounds = array<i64: 1, 32, 1>}, {pipeline_mode = #tpu.pipeline_mode<synchronous>, transform_indices = @transform_4, window_bounds = array<i64: 824, 32>}, {pipeline_mode = #tpu.pipeline_mode<synchronous>, transform_indices = @transform_5, window_bounds = array<i64: 272, 64>}, {pipeline_mode = #tpu.pipeline_mode<synchronous>, transform_indices = @transform_6, window_bounds = array<i64: 64, 256>}, {transform_indices = @transform_7, window_bounds = array<i64: 1, 3, 256>}]} {
    %c0 = arith.constant 0 : index
    %c0_0 = arith.constant 0 : index
    %c0_1 = arith.constant 0 : index
    %0 = vector.load %arg2[%c0, %c0_0, %c0_1] : memref<1x32x8xf32, #tpu.memory_space<vmem>>, vector<1x32x8xf32>
    %1 = vector.shape_cast %0 : vector<1x32x8xf32> to vector<32x8xf32>
    %c0_2 = arith.constant 0 : index
    %c0_3 = arith.constant 0 : index
    %c0_4 = arith.constant 0 : index
    %2 = vector.load %arg3[%c0_2, %c0_3, %c0_4] : memref<1x1x8xf32, #tpu.memory_space<vmem>>, vector<1x1x8xf32>
    %3 = vector.shape_cast %2 : vector<1x1x8xf32> to vector<1x8xf32>
    %cst = arith.constant dense<0.000000e+00> : vector<1xf32>
    %4 = vector.multi_reduction <add>, %3, %cst [1] : vector<1x8xf32> to vector<1xf32>
    %5 = vector.shape_cast %4 : vector<1xf32> to vector<1x1xf32>
    %cst_5 = arith.constant 1.000000e+00 : f32
    %6 = vector.broadcast %cst_5 : f32 to vector<1x1xf32>
    %7 = arith.maximumf %5, %6 : vector<1x1xf32>
    %8 = vector.broadcast %3 : vector<1x8xf32> to vector<32x8xf32>
    %9 = arith.mulf %1, %8 : vector<32x8xf32>
    %cst_6 = arith.constant dense<0.000000e+00> : vector<32xf32>
    %10 = vector.multi_reduction <add>, %9, %cst_6 [1] : vector<32x8xf32> to vector<32xf32>
    %11 = vector.shape_cast %10 : vector<32xf32> to vector<32x1xf32>
    %12 = vector.broadcast %7 : vector<1x1xf32> to vector<32x1xf32>
    %13 = arith.divf %11, %12 : vector<32x1xf32>
    %c264 = arith.constant 264 : index
    %c0_7 = arith.constant 0 : index
    %14 = vector.load %arg5[%c264, %c0_7] : memref<824x32xf32, #tpu.memory_space<vmem>>, vector<88x32xf32>
    %cst_8 = arith.constant dense<0.000000e+00> : vector<88x1xf32>
    %15 = tpu.matmul %14, %13, %cst_8 {dimension_numbers = #tpu.dot_dimension_numbers<[1], [0], [0], [1], [0, 0, 1, 1], [], []>} : vector<88x32xf32>, vector<32x1xf32>, vector<88x1xf32> -> vector<88x1xf32>
    %c352 = arith.constant 352 : index
    %c0_9 = arith.constant 0 : index
    %16 = vector.load %arg5[%c352, %c0_9] : memref<824x32xf32, #tpu.memory_space<vmem>>, vector<88x1xf32>
    %17 = arith.addf %15, %16 : vector<88x1xf32>
    %18 = arith.negf %17 : vector<88x1xf32>
    %19 = math.exp %18 : vector<88x1xf32>
    %cst_10 = arith.constant 1.000000e+00 : f32
    %20 = vector.broadcast %cst_10 : f32 to vector<88x1xf32>
    %21 = arith.addf %20, %19 : vector<88x1xf32>
    %22 = arith.divf %20, %21 : vector<88x1xf32>
    %c0_11 = arith.constant 0 : index
    %c0_12 = arith.constant 0 : index
    %c0_13 = arith.constant 0 : index
    %23 = vector.load %arg1[%c0_11, %c0_12, %c0_13] : memref<1x4x256xf32, #tpu.memory_space<vmem>>, vector<1x4x256xf32>
    %24 = vector.shape_cast %23 : vector<1x4x256xf32> to vector<4x256xf32>
    %c88 = arith.constant 88 : index
    %c0_14 = arith.constant 0 : index
    %25 = vector.load %arg5[%c88, %c0_14] : memref<824x32xf32, #tpu.memory_space<vmem>>, vector<8x4xf32>
    %cst_15 = arith.constant dense<0.000000e+00> : vector<8x256xf32>
    %26 = tpu.matmul %25, %24, %cst_15 {dimension_numbers = #tpu.dot_dimension_numbers<[1], [0], [0], [1], [0, 0, 1, 1], [], []>} : vector<8x4xf32>, vector<4x256xf32>, vector<8x256xf32> -> vector<8x256xf32>
    %c176 = arith.constant 176 : index
    %c0_16 = arith.constant 0 : index
    %27 = vector.load %arg5[%c176, %c0_16] : memref<824x32xf32, #tpu.memory_space<vmem>>, vector<8x1xf32>
    %28 = vector.broadcast %27 : vector<8x1xf32> to vector<8x256xf32>
    %29 = arith.addf %26, %28 : vector<8x256xf32>
    %cst_17 = arith.constant 0.000000e+00 : f32
    %30 = vector.broadcast %cst_17 : f32 to vector<8x256xf32>
    %31 = arith.maximumf %29, %30 : vector<8x256xf32>
    %32 = vector.extract_strided_slice %22 {offsets = [0, 0], sizes = [8, 1], strides = [1, 1]} : vector<88x1xf32> to vector<8x1xf32>
    %33 = vector.broadcast %32 : vector<8x1xf32> to vector<8x256xf32>
    %34 = arith.mulf %31, %33 : vector<8x256xf32>
    %c0_18 = arith.constant 0 : index
    %c0_19 = arith.constant 0 : index
    %35 = vector.load %arg6[%c0_18, %c0_19] : memref<272x64xf32, #tpu.memory_space<vmem>>, vector<256x64xf32>
    %cst_20 = arith.constant dense<0.000000e+00> : vector<8x64xf32>
    %36 = tpu.matmul %34, %35, %cst_20 {dimension_numbers = #tpu.dot_dimension_numbers<[1], [0], [0], [1], [0, 0, 1, 1], [], []>} : vector<8x256xf32>, vector<256x64xf32>, vector<8x64xf32> -> vector<8x64xf32>
    %c96 = arith.constant 96 : index
    %c0_21 = arith.constant 0 : index
    %37 = vector.load %arg5[%c96, %c0_21] : memref<824x32xf32, #tpu.memory_space<vmem>>, vector<16x8xf32>
    %cst_22 = arith.constant dense<0.000000e+00> : vector<16x64xf32>
    %38 = tpu.matmul %37, %36, %cst_22 {dimension_numbers = #tpu.dot_dimension_numbers<[1], [0], [0], [1], [0, 0, 1, 1], [], []>} : vector<16x8xf32>, vector<8x64xf32>, vector<16x64xf32> -> vector<16x64xf32>
    %c184 = arith.constant 184 : index
    %c0_23 = arith.constant 0 : index
    %39 = vector.load %arg5[%c184, %c0_23] : memref<824x32xf32, #tpu.memory_space<vmem>>, vector<16x1xf32>
    %40 = vector.broadcast %39 : vector<16x1xf32> to vector<16x64xf32>
    %41 = arith.addf %38, %40 : vector<16x64xf32>
    %cst_24 = arith.constant 0.000000e+00 : f32
    %42 = vector.broadcast %cst_24 : f32 to vector<16x64xf32>
    %43 = arith.maximumf %41, %42 : vector<16x64xf32>
    %44 = vector.extract_strided_slice %22 {offsets = [8, 0], sizes = [16, 1], strides = [1, 1]} : vector<88x1xf32> to vector<16x1xf32>
    %45 = vector.broadcast %44 : vector<16x1xf32> to vector<16x64xf32>
    %46 = arith.mulf %43, %45 : vector<16x64xf32>
    %c0_25 = arith.constant 0 : index
    %c0_26 = arith.constant 0 : index
    %47 = vector.load %arg5[%c0_25, %c0_26] : memref<824x32xf32, #tpu.memory_space<vmem>>, vector<64x16xf32>
    %cst_27 = arith.constant dense<0.000000e+00> : vector<16x16xf32>
    %48 = tpu.matmul %46, %47, %cst_27 {dimension_numbers = #tpu.dot_dimension_numbers<[1], [0], [0], [1], [0, 0, 1, 1], [], []>} : vector<16x64xf32>, vector<64x16xf32>, vector<16x16xf32> -> vector<16x16xf32>
    %c112 = arith.constant 112 : index
    %c0_28 = arith.constant 0 : index
    %49 = vector.load %arg5[%c112, %c0_28] : memref<824x32xf32, #tpu.memory_space<vmem>>, vector<32x16xf32>
    %cst_29 = arith.constant dense<0.000000e+00> : vector<32x16xf32>
    %50 = tpu.matmul %49, %48, %cst_29 {dimension_numbers = #tpu.dot_dimension_numbers<[1], [0], [0], [1], [0, 0, 1, 1], [], []>} : vector<32x16xf32>, vector<16x16xf32>, vector<32x16xf32> -> vector<32x16xf32>
    %c200 = arith.constant 200 : index
    %c0_30 = arith.constant 0 : index
    %51 = vector.load %arg5[%c200, %c0_30] : memref<824x32xf32, #tpu.memory_space<vmem>>, vector<32x1xf32>
    %52 = vector.broadcast %51 : vector<32x1xf32> to vector<32x16xf32>
    %53 = arith.addf %50, %52 : vector<32x16xf32>
    %cst_31 = arith.constant 0.000000e+00 : f32
    %54 = vector.broadcast %cst_31 : f32 to vector<32x16xf32>
    %55 = arith.maximumf %53, %54 : vector<32x16xf32>
    %56 = vector.extract_strided_slice %22 {offsets = [24, 0], sizes = [32, 1], strides = [1, 1]} : vector<88x1xf32> to vector<32x1xf32>
    %57 = vector.broadcast %56 : vector<32x1xf32> to vector<32x16xf32>
    %58 = arith.mulf %55, %57 : vector<32x16xf32>
    %c64 = arith.constant 64 : index
    %c0_32 = arith.constant 0 : index
    %59 = vector.load %arg5[%c64, %c0_32] : memref<824x32xf32, #tpu.memory_space<vmem>>, vector<16x4xf32>
    %cst_33 = arith.constant dense<0.000000e+00> : vector<32x4xf32>
    %60 = tpu.matmul %58, %59, %cst_33 {dimension_numbers = #tpu.dot_dimension_numbers<[1], [0], [0], [1], [0, 0, 1, 1], [], []>} : vector<32x16xf32>, vector<16x4xf32>, vector<32x4xf32> -> vector<32x4xf32>
    %c144 = arith.constant 144 : index
    %c0_34 = arith.constant 0 : index
    %61 = vector.load %arg5[%c144, %c0_34] : memref<824x32xf32, #tpu.memory_space<vmem>>, vector<32x32xf32>
    %cst_35 = arith.constant dense<0.000000e+00> : vector<32x4xf32>
    %62 = tpu.matmul %61, %60, %cst_35 {dimension_numbers = #tpu.dot_dimension_numbers<[1], [0], [0], [1], [0, 0, 1, 1], [], []>} : vector<32x32xf32>, vector<32x4xf32>, vector<32x4xf32> -> vector<32x4xf32>
    %c232 = arith.constant 232 : index
    %c0_36 = arith.constant 0 : index
    %63 = vector.load %arg5[%c232, %c0_36] : memref<824x32xf32, #tpu.memory_space<vmem>>, vector<32x1xf32>
    %64 = vector.broadcast %63 : vector<32x1xf32> to vector<32x4xf32>
    %65 = arith.addf %62, %64 : vector<32x4xf32>
    %cst_37 = arith.constant 0.000000e+00 : f32
    %66 = vector.broadcast %cst_37 : f32 to vector<32x4xf32>
    %67 = arith.maximumf %65, %66 : vector<32x4xf32>
    %68 = vector.extract_strided_slice %22 {offsets = [56, 0], sizes = [32, 1], strides = [1, 1]} : vector<88x1xf32> to vector<32x1xf32>
    %69 = vector.broadcast %68 : vector<32x1xf32> to vector<32x4xf32>
    %70 = arith.mulf %67, %69 : vector<32x4xf32>
    %c80 = arith.constant 80 : index
    %c0_38 = arith.constant 0 : index
    %71 = vector.load %arg5[%c80, %c0_38] : memref<824x32xf32, #tpu.memory_space<vmem>>, vector<4x16xf32>
    %c440 = arith.constant 440 : index
    %c0_39 = arith.constant 0 : index
    %72 = vector.load %arg5[%c440, %c0_39] : memref<824x32xf32, #tpu.memory_space<vmem>>, vector<32x32xf32>
    %cst_40 = arith.constant dense<0.000000e+00> : vector<32x4xf32>
    %73 = tpu.matmul %72, %70, %cst_40 {dimension_numbers = #tpu.dot_dimension_numbers<[1], [0], [0], [1], [0, 0, 1, 1], [], []>} : vector<32x32xf32>, vector<32x4xf32>, vector<32x4xf32> -> vector<32x4xf32>
    %cst_41 = arith.constant dense<0.000000e+00> : vector<32x16xf32>
    %74 = tpu.matmul %73, %71, %cst_41 {dimension_numbers = #tpu.dot_dimension_numbers<[1], [0], [0], [1], [0, 0, 1, 1], [], []>} : vector<32x4xf32>, vector<4x16xf32>, vector<32x16xf32> -> vector<32x16xf32>
    %c472 = arith.constant 472 : index
    %c0_42 = arith.constant 0 : index
    %75 = vector.load %arg5[%c472, %c0_42] : memref<824x32xf32, #tpu.memory_space<vmem>>, vector<32x32xf32>
    %cst_43 = arith.constant dense<0.000000e+00> : vector<32x16xf32>
    %76 = tpu.matmul %75, %58, %cst_43 {dimension_numbers = #tpu.dot_dimension_numbers<[1], [0], [0], [1], [0, 0, 1, 1], [], []>} : vector<32x32xf32>, vector<32x16xf32>, vector<32x16xf32> -> vector<32x16xf32>
    %77 = arith.addf %74, %76 : vector<32x16xf32>
    %c504 = arith.constant 504 : index
    %c0_44 = arith.constant 0 : index
    %78 = vector.load %arg5[%c504, %c0_44] : memref<824x32xf32, #tpu.memory_space<vmem>>, vector<32x1xf32>
    %79 = vector.broadcast %78 : vector<32x1xf32> to vector<32x16xf32>
    %80 = arith.addf %77, %79 : vector<32x16xf32>
    %cst_45 = arith.constant 0.000000e+00 : f32
    %81 = vector.broadcast %cst_45 : f32 to vector<32x16xf32>
    %82 = arith.maximumf %80, %81 : vector<32x16xf32>
    %c256 = arith.constant 256 : index
    %c0_46 = arith.constant 0 : index
    %83 = vector.load %arg6[%c256, %c0_46] : memref<272x64xf32, #tpu.memory_space<vmem>>, vector<16x64xf32>
    %c536 = arith.constant 536 : index
    %c0_47 = arith.constant 0 : index
    %84 = vector.load %arg5[%c536, %c0_47] : memref<824x32xf32, #tpu.memory_space<vmem>>, vector<32x32xf32>
    %cst_48 = arith.constant dense<0.000000e+00> : vector<32x16xf32>
    %85 = tpu.matmul %84, %82, %cst_48 {dimension_numbers = #tpu.dot_dimension_numbers<[1], [0], [0], [1], [0, 0, 1, 1], [], []>} : vector<32x32xf32>, vector<32x16xf32>, vector<32x16xf32> -> vector<32x16xf32>
    %cst_49 = arith.constant dense<0.000000e+00> : vector<32x64xf32>
    %86 = tpu.matmul %85, %83, %cst_49 {dimension_numbers = #tpu.dot_dimension_numbers<[1], [0], [0], [1], [0, 0, 1, 1], [], []>} : vector<32x16xf32>, vector<16x64xf32>, vector<32x64xf32> -> vector<32x64xf32>
    %c568 = arith.constant 568 : index
    %c0_50 = arith.constant 0 : index
    %87 = vector.load %arg5[%c568, %c0_50] : memref<824x32xf32, #tpu.memory_space<vmem>>, vector<32x16xf32>
    %cst_51 = arith.constant dense<0.000000e+00> : vector<32x64xf32>
    %88 = tpu.matmul %87, %46, %cst_51 {dimension_numbers = #tpu.dot_dimension_numbers<[1], [0], [0], [1], [0, 0, 1, 1], [], []>} : vector<32x16xf32>, vector<16x64xf32>, vector<32x64xf32> -> vector<32x64xf32>
    %89 = arith.addf %86, %88 : vector<32x64xf32>
    %c600 = arith.constant 600 : index
    %c0_52 = arith.constant 0 : index
    %90 = vector.load %arg5[%c600, %c0_52] : memref<824x32xf32, #tpu.memory_space<vmem>>, vector<32x1xf32>
    %91 = vector.broadcast %90 : vector<32x1xf32> to vector<32x64xf32>
    %92 = arith.addf %89, %91 : vector<32x64xf32>
    %cst_53 = arith.constant 0.000000e+00 : f32
    %93 = vector.broadcast %cst_53 : f32 to vector<32x64xf32>
    %94 = arith.maximumf %92, %93 : vector<32x64xf32>
    %c0_54 = arith.constant 0 : index
    %c0_55 = arith.constant 0 : index
    %95 = vector.load %arg7[%c0_54, %c0_55] : memref<64x256xf32, #tpu.memory_space<vmem>>, vector<64x256xf32>
    %c632 = arith.constant 632 : index
    %c0_56 = arith.constant 0 : index
    %96 = vector.load %arg5[%c632, %c0_56] : memref<824x32xf32, #tpu.memory_space<vmem>>, vector<32x32xf32>
    %cst_57 = arith.constant dense<0.000000e+00> : vector<32x64xf32>
    %97 = tpu.matmul %96, %94, %cst_57 {dimension_numbers = #tpu.dot_dimension_numbers<[1], [0], [0], [1], [0, 0, 1, 1], [], []>} : vector<32x32xf32>, vector<32x64xf32>, vector<32x64xf32> -> vector<32x64xf32>
    %cst_58 = arith.constant dense<0.000000e+00> : vector<32x256xf32>
    %98 = tpu.matmul %97, %95, %cst_58 {dimension_numbers = #tpu.dot_dimension_numbers<[1], [0], [0], [1], [0, 0, 1, 1], [], []>} : vector<32x64xf32>, vector<64x256xf32>, vector<32x256xf32> -> vector<32x256xf32>
    %c664 = arith.constant 664 : index
    %c0_59 = arith.constant 0 : index
    %99 = vector.load %arg5[%c664, %c0_59] : memref<824x32xf32, #tpu.memory_space<vmem>>, vector<32x8xf32>
    %cst_60 = arith.constant dense<0.000000e+00> : vector<32x256xf32>
    %100 = tpu.matmul %99, %34, %cst_60 {dimension_numbers = #tpu.dot_dimension_numbers<[1], [0], [0], [1], [0, 0, 1, 1], [], []>} : vector<32x8xf32>, vector<8x256xf32>, vector<32x256xf32> -> vector<32x256xf32>
    %101 = arith.addf %98, %100 : vector<32x256xf32>
    %c696 = arith.constant 696 : index
    %c0_61 = arith.constant 0 : index
    %102 = vector.load %arg5[%c696, %c0_61] : memref<824x32xf32, #tpu.memory_space<vmem>>, vector<32x1xf32>
    %103 = vector.broadcast %102 : vector<32x1xf32> to vector<32x256xf32>
    %104 = arith.addf %101, %103 : vector<32x256xf32>
    %cst_62 = arith.constant 0.000000e+00 : f32
    %105 = vector.broadcast %cst_62 : f32 to vector<32x256xf32>
    %106 = arith.maximumf %104, %105 : vector<32x256xf32>
    %c728 = arith.constant 728 : index
    %c0_63 = arith.constant 0 : index
    %107 = vector.load %arg5[%c728, %c0_63] : memref<824x32xf32, #tpu.memory_space<vmem>>, vector<2x32xf32>
    %cst_64 = arith.constant dense<0.000000e+00> : vector<2x256xf32>
    %108 = tpu.matmul %107, %106, %cst_64 {dimension_numbers = #tpu.dot_dimension_numbers<[1], [0], [0], [1], [0, 0, 1, 1], [], []>} : vector<2x32xf32>, vector<32x256xf32>, vector<2x256xf32> -> vector<2x256xf32>
    %c736 = arith.constant 736 : index
    %c0_65 = arith.constant 0 : index
    %109 = vector.load %arg5[%c736, %c0_65] : memref<824x32xf32, #tpu.memory_space<vmem>>, vector<2x1xf32>
    %110 = vector.broadcast %109 : vector<2x1xf32> to vector<2x256xf32>
    %111 = arith.addf %108, %110 : vector<2x256xf32>
    %cst_66 = arith.constant dense<0.000000e+00> : vector<32xf32>
    %112 = vector.multi_reduction <add>, %106, %cst_66 [1] : vector<32x256xf32> to vector<32xf32>
    %113 = vector.shape_cast %112 : vector<32xf32> to vector<32x1xf32>
    %cst_67 = arith.constant 2.560000e+02 : f32
    %114 = vector.broadcast %cst_67 : f32 to vector<32x1xf32>
    %115 = arith.divf %113, %114 : vector<32x1xf32>
    %c744 = arith.constant 744 : index
    %c0_68 = arith.constant 0 : index
    %116 = vector.load %arg5[%c744, %c0_68] : memref<824x32xf32, #tpu.memory_space<vmem>>, vector<32x32xf32>
    %117 = vector.broadcast %115 : vector<32x1xf32> to vector<32x32xf32>
    %118 = arith.mulf %116, %117 : vector<32x32xf32>
    %cst_69 = arith.constant dense<0.000000e+00> : vector<32xf32>
    %119 = vector.multi_reduction <add>, %118, %cst_69 [0] : vector<32x32xf32> to vector<32xf32>
    %120 = vector.shape_cast %119 : vector<32xf32> to vector<1x32xf32>
    %c776 = arith.constant 776 : index
    %c0_70 = arith.constant 0 : index
    %121 = vector.load %arg5[%c776, %c0_70] : memref<824x32xf32, #tpu.memory_space<vmem>>, vector<1x32xf32>
    %122 = arith.addf %120, %121 : vector<1x32xf32>
    %c784 = arith.constant 784 : index
    %c0_71 = arith.constant 0 : index
    %123 = vector.load %arg5[%c784, %c0_71] : memref<824x32xf32, #tpu.memory_space<vmem>>, vector<32x32xf32>
    %c0_72 = arith.constant 0 : index
    %c0_73 = arith.constant 0 : index
    %c0_74 = arith.constant 0 : index
    %124 = vector.load %arg4[%c0_72, %c0_73, %c0_74] : memref<1x32x1xf32, #tpu.memory_space<vmem>>, vector<1x32x1xf32>
    %125 = vector.shape_cast %124 : vector<1x32x1xf32> to vector<32x1xf32>
    %126 = vector.broadcast %125 : vector<32x1xf32> to vector<32x32xf32>
    %127 = arith.mulf %123, %126 : vector<32x32xf32>
    %cst_75 = arith.constant dense<0.000000e+00> : vector<32xf32>
    %128 = vector.multi_reduction <add>, %127, %cst_75 [0] : vector<32x32xf32> to vector<32xf32>
    %129 = vector.shape_cast %128 : vector<32xf32> to vector<1x32xf32>
    %c816 = arith.constant 816 : index
    %c0_76 = arith.constant 0 : index
    %130 = vector.load %arg5[%c816, %c0_76] : memref<824x32xf32, #tpu.memory_space<vmem>>, vector<1x32xf32>
    %131 = arith.addf %129, %130 : vector<1x32xf32>
    %132 = arith.subf %122, %131 : vector<1x32xf32>
    %c0_77 = arith.constant 0 : index
    %c0_78 = arith.constant 0 : index
    %c0_79 = arith.constant 0 : index
    %133 = vector.load %arg8[%c0_77, %c0_78, %c0_79] : memref<1x3x256xf32, #tpu.memory_space<vmem>>, vector<1x2x256xf32>
    %134 = vector.shape_cast %133 : vector<1x2x256xf32> to vector<2x256xf32>
    %135 = vector.shape_cast %111 : vector<2x256xf32> to vector<1x2x256xf32>
    tpu.vector_store %arg8[%c0_77, %c0_78, %c0_79], %135 {strides = array<i32>} : memref<1x3x256xf32, #tpu.memory_space<vmem>>, vector<1x2x256xf32>,
    %cst_80 = arith.constant 0.000000e+00 : f32
    %136 = vector.broadcast %cst_80 : f32 to vector<1x256xf32>
    %c0_81 = arith.constant 0 : index
    %c2 = arith.constant 2 : index
    %c0_82 = arith.constant 0 : index
    %137 = vector.load %arg8[%c0_81, %c2, %c0_82] : memref<1x3x256xf32, #tpu.memory_space<vmem>>, vector<1x1x256xf32>
    %138 = vector.shape_cast %137 : vector<1x1x256xf32> to vector<1x256xf32>
    %139 = vector.shape_cast %136 : vector<1x256xf32> to vector<1x1x256xf32>
    tpu.vector_store %arg8[%c0_81, %c2, %c0_82], %139 {strides = array<i32>} : memref<1x3x256xf32, #tpu.memory_space<vmem>>, vector<1x1x256xf32>,
    %c0_83 = arith.constant 0 : index
    %c2_84 = arith.constant 2 : index
    %c0_85 = arith.constant 0 : index
    %140 = vector.load %arg8[%c0_83, %c2_84, %c0_85] : memref<1x3x256xf32, #tpu.memory_space<vmem>>, vector<1x1x32xf32>
    %141 = vector.shape_cast %140 : vector<1x1x32xf32> to vector<1x32xf32>
    %142 = vector.shape_cast %132 : vector<1x32xf32> to vector<1x1x32xf32>
    tpu.vector_store %arg8[%c0_83, %c2_84, %c0_85], %142 {strides = array<i32>} : memref<1x3x256xf32, #tpu.memory_space<vmem>>, vector<1x1x32xf32>,
    return
  }
  func.func @transform_0(%arg0: i32) -> (i32, i32, i32) {
    %c0_i32 = arith.constant 0 : i32
    %c0_i32_0 = arith.constant 0 : i32
    %c0_i32_1 = arith.constant 0 : i32
    return %arg0, %c0_i32, %c0_i32_0 : i32, i32, i32
  }
  func.func @transform_1(%arg0: i32) -> (i32, i32, i32) {
    %c0_i32 = arith.constant 0 : i32
    %c0_i32_0 = arith.constant 0 : i32
    %c0_i32_1 = arith.constant 0 : i32
    return %arg0, %c0_i32, %c0_i32_0 : i32, i32, i32
  }
  func.func @transform_2(%arg0: i32) -> (i32, i32, i32) {
    %c0_i32 = arith.constant 0 : i32
    %c0_i32_0 = arith.constant 0 : i32
    %c0_i32_1 = arith.constant 0 : i32
    return %arg0, %c0_i32, %c0_i32_0 : i32, i32, i32
  }
  func.func @transform_3(%arg0: i32) -> (i32, i32, i32) {
    %c0_i32 = arith.constant 0 : i32
    %c0_i32_0 = arith.constant 0 : i32
    %c0_i32_1 = arith.constant 0 : i32
    return %arg0, %c0_i32, %c0_i32_0 : i32, i32, i32
  }
  func.func @transform_4(%arg0: i32) -> (i32, i32) {
    %c0_i32 = arith.constant 0 : i32
    %c0_i32_0 = arith.constant 0 : i32
    %c0_i32_1 = arith.constant 0 : i32
    return %c0_i32, %c0_i32_0 : i32, i32
  }
  func.func @transform_5(%arg0: i32) -> (i32, i32) {
    %c0_i32 = arith.constant 0 : i32
    %c0_i32_0 = arith.constant 0 : i32
    %c0_i32_1 = arith.constant 0 : i32
    return %c0_i32, %c0_i32_0 : i32, i32
  }
  func.func @transform_6(%arg0: i32) -> (i32, i32) {
    %c0_i32 = arith.constant 0 : i32
    %c0_i32_0 = arith.constant 0 : i32
    %c0_i32_1 = arith.constant 0 : i32
    return %c0_i32, %c0_i32_0 : i32, i32
  }
  func.func @transform_7(%arg0: i32) -> (i32, i32, i32) {
    %c0_i32 = arith.constant 0 : i32
    %c0_i32_0 = arith.constant 0 : i32
    %c0_i32_1 = arith.constant 0 : i32
    return %arg0, %c0_i32, %c0_i32_0 : i32, i32, i32
  }
}

</mosaic_0001>

<llo_original>
// kernel: lavt_simple_decode.1
$region0: #{lavt_simple_decode.1}
  #allocation0 [shape = 'u32[]', space=smem, size = 0x4, offset = 0x4, fixed_abs, tag = 'smem constant byte address 0x4 - core index']
  #allocation1 [shape = 'u32[72,128]{1,0:T(1,128)}', space=vmem, size = 0x9000, scoped, tag = 'internal scratch']
  %s0 = inlined_call_operand.vmem [shape: f32[2,4,256], index: 0, kind: input, shape index: {}]
  %s1 = inlined_call_operand.vmem [shape: f32[2,32,8], index: 1, kind: input, shape index: {}]
  %s2 = inlined_call_operand.vmem [shape: f32[2,1,8], index: 2, kind: input, shape index: {}]
  %s3 = inlined_call_operand.vmem [shape: f32[2,32,1], index: 3, kind: input, shape index: {}]
  %s4 = inlined_call_operand.vmem [shape: f32[824,32], index: 4, kind: input, shape index: {}]
  %s5 = inlined_call_operand.vmem [shape: f32[272,64], index: 5, kind: input, shape index: {}]
  %s6 = inlined_call_operand.vmem [shape: f32[64,256], index: 6, kind: input, shape index: {}]
  %s7 = inlined_call_operand.vmem [shape: f32[2,3,256], index: 7, kind: output, shape index: {}]
  %s8 = sld [smem:[#allocation0]]
  $region61: #{lavt_simple_decode.1} parent=0
    _
  %s10 = ssub.s32 1, %s8
  %s11 = scalar_select 0, %s10, %s8
  loop: start=0, step=1, limit=4
  $region2: #{lavt_simple_decode.1} parent=0 // loop_pre_header
    _
  $region3: #{lavt_simple_decode.1} parent=0 // loop_header
    %s13 = sphi 0, %s17
    %p14 = scmp.ge.s32.totalorder %s13, 4
    %s23 = sphi 0, %s25
    %s26 = sphi 0, %s23
    %s27 = sphi 0, %s26
    %s43 = sphi 0, %s27
    %s49 = sphi 0, %s51
    %s52 = sphi 0, %s49
    %s53 = sphi 0, %s52
    %s69 = sphi 0, %s53
    %s75 = sphi 0, %s77
    %s78 = sphi 0, %s75
    %s79 = sphi 0, %s78
    %s95 = sphi 0, %s79
    %s101 = sphi 0, %s103
    %s104 = sphi 0, %s101
    %s105 = sphi 0, %s104
    %s121 = sphi 0, %s105
    %s125 = sphi 0, %s125
    %s127 = sphi 0, %s125
    %s128 = sphi 0, %s127
    %s142 = sphi 0, %s128
    %s146 = sphi 0, %s146
    %s148 = sphi 0, %s146
    %s149 = sphi 0, %s148
    %s163 = sphi 0, %s149
    %s167 = sphi 0, %s167
    %s169 = sphi 0, %s167
    %s170 = sphi 0, %s169
    %s184 = sphi 0, %s170
    %s190 = sphi 0, %s192
    %s193 = sphi 0, %s190
    %s194 = sphi 0, %s193
    %s210 = sphi 0, %s194
  $region4: #{lavt_simple_decode.1} parent=0 // loop_header_branch
    %16 = sbr.rel (%p14) target = $region8
  $region5: #{lavt_simple_decode.1} parent=0 // loop_body
    %s18 = ssub.s32 %s13, 1
    %s19 = ssub.s32 %s13, 2
    %s20 = sadd.s32 %s13, 1
    %s21 = ssub.s32 %s13, %s20
    %p22 = scmp.eq.s32.totalorder %s21, 0
    %s24 = sadd.s32 %s23, 1
    %s25 = scalar_select %p22, %s23, %s24
    %p28 = pneg %p22
    %p29 = scmp.eq.s32.totalorder %s13, 1
    %p30 = por %p28, %p29
    %p31 = scmp.ne.s32.totalorder %s23, %s26
    %p32 = scmp.eq.s32.totalorder %s13, 0
    %p33 = por %p31, %p32
    %p34 = scmp.ne.s32.totalorder %s23, %s26
    %p35 = scmp.eq.s32.totalorder %s18, 1
    %p36 = por %p34, %p35
    %p37 = scmp.ne.s32.totalorder %s26, %s27
    %p38 = scmp.eq.s32.totalorder %s18, 0
    %p39 = por %p37, %p38
    %p40 = scmp.ne.s32.totalorder %s26, %s27
    %p41 = scmp.eq.s32.totalorder %s19, 1
    %p42 = por %p40, %p41
    %p44 = scmp.ne.s32.totalorder %s27, %s43
    %p45 = scmp.eq.s32.totalorder %s19, 0
    %p46 = por %p44, %p45
    %s47 = ssub.s32 %s13, %s20
    %p48 = scmp.eq.s32.totalorder %s47, 0
    %s50 = sadd.s32 %s49, 1
    %s51 = scalar_select %p48, %s49, %s50
    %p54 = pneg %p48
    %p55 = scmp.eq.s32.totalorder %s13, 1
    %p56 = por %p54, %p55
    %p57 = scmp.ne.s32.totalorder %s49, %s52
    %p58 = scmp.eq.s32.totalorder %s13, 0
    %p59 = por %p57, %p58
    %p60 = scmp.ne.s32.totalorder %s49, %s52
    %p61 = scmp.eq.s32.totalorder %s18, 1
    %p62 = por %p60, %p61
    %p63 = scmp.ne.s32.totalorder %s52, %s53
    %p64 = scmp.eq.s32.totalorder %s18, 0
    %p65 = por %p63, %p64
    %p66 = scmp.ne.s32.totalorder %s52, %s53
    %p67 = scmp.eq.s32.totalorder %s19, 1
    %p68 = por %p66, %p67
    %p70 = scmp.ne.s32.totalorder %s53, %s69
    %p71 = scmp.eq.s32.totalorder %s19, 0
    %p72 = por %p70, %p71
    %s73 = ssub.s32 %s13, %s20
    %p74 = scmp.eq.s32.totalorder %s73, 0
    %s76 = sadd.s32 %s75, 1
    %s77 = scalar_select %p74, %s75, %s76
    %p80 = pneg %p74
    %p81 = scmp.eq.s32.totalorder %s13, 1
    %p82 = por %p80, %p81
    %p83 = scmp.ne.s32.totalorder %s75, %s78
    %p84 = scmp.eq.s32.totalorder %s13, 0
    %p85 = por %p83, %p84
    %p86 = scmp.ne.s32.totalorder %s75, %s78
    %p87 = scmp.eq.s32.totalorder %s18, 1
    %p88 = por %p86, %p87
    %p89 = scmp.ne.s32.totalorder %s78, %s79
    %p90 = scmp.eq.s32.totalorder %s18, 0
    %p91 = por %p89, %p90
    %p92 = scmp.ne.s32.totalorder %s78, %s79
    %p93 = scmp.eq.s32.totalorder %s19, 1
    %p94 = por %p92, %p93
    %p96 = scmp.ne.s32.totalorder %s79, %s95
    %p97 = scmp.eq.s32.totalorder %s19, 0
    %p98 = por %p96, %p97
    %s99 = ssub.s32 %s13, %s20
    %p100 = scmp.eq.s32.totalorder %s99, 0
    %s102 = sadd.s32 %s101, 1
    %s103 = scalar_select %p100, %s101, %s102
    %p106 = pneg %p100
    %p107 = scmp.eq.s32.totalorder %s13, 1
    %p108 = por %p106, %p107
    %p109 = scmp.ne.s32.totalorder %s101, %s104
    %p110 = scmp.eq.s32.totalorder %s13, 0
    %p111 = por %p109, %p110
    %p112 = scmp.ne.s32.totalorder %s101, %s104
    %p113 = scmp.eq.s32.totalorder %s18, 1
    %p114 = por %p112, %p113
    %p115 = scmp.ne.s32.totalorder %s104, %s105
    %p116 = scmp.eq.s32.totalorder %s18, 0
    %p117 = por %p115, %p116
    %p118 = scmp.ne.s32.totalorder %s104, %s105
    %p119 = scmp.eq.s32.totalorder %s19, 1
    %p120 = por %p118, %p119
    %p122 = scmp.ne.s32.totalorder %s105, %s121
    %p123 = scmp.eq.s32.totalorder %s19, 0
    %p124 = por %p122, %p123
    %s126 = sadd.s32 %s125, 1
    %p129 = scmp.eq.s32.totalorder %s13, 1
    %p130 = scmp.ne.s32.totalorder %s125, %s127
    %p131 = scmp.eq.s32.totalorder %s13, 0
    %p132 = por %p130, %p131
    %p133 = scmp.ne.s32.totalorder %s125, %s127
    %p134 = scmp.eq.s32.totalorder %s18, 1
    %p135 = por %p133, %p134
    %p136 = scmp.ne.s32.totalorder %s127, %s128
    %p137 = scmp.eq.s32.totalorder %s18, 0
    %p138 = por %p136, %p137
    %p139 = scmp.ne.s32.totalorder %s127, %s128
    %p140 = scmp.eq.s32.totalorder %s19, 1
    %p141 = por %p139, %p140
    %p143 = scmp.ne.s32.totalorder %s128, %s142
    %p144 = scmp.eq.s32.totalorder %s19, 0
    %p145 = por %p143, %p144
    %s147 = sadd.s32 %s146, 1
    %p150 = scmp.eq.s32.totalorder %s13, 1
    %p151 = scmp.ne.s32.totalorder %s146, %s148
    %p152 = scmp.eq.s32.totalorder %s13, 0
    %p153 = por %p151, %p152
    %p154 = scmp.ne.s32.totalorder %s146, %s148
    %p155 = scmp.eq.s32.totalorder %s18, 1
    %p156 = por %p154, %p155
    %p157 = scmp.ne.s32.totalorder %s148, %s149
    %p158 = scmp.eq.s32.totalorder %s18, 0
    %p159 = por %p157, %p158
    %p160 = scmp.ne.s32.totalorder %s148, %s149
    %p161 = scmp.eq.s32.totalorder %s19, 1
    %p162 = por %p160, %p161
    %p164 = scmp.ne.s32.totalorder %s149, %s163
    %p165 = scmp.eq.s32.totalorder %s19, 0
    %p166 = por %p164, %p165
    %s168 = sadd.s32 %s167, 1
    %p171 = scmp.eq.s32.totalorder %s13, 1
    %p172 = scmp.ne.s32.totalorder %s167, %s169
    %p173 = scmp.eq.s32.totalorder %s13, 0
    %p174 = por %p172, %p173
    %p175 = scmp.ne.s32.totalorder %s167, %s169
    %p176 = scmp.eq.s32.totalorder %s18, 1
    %p177 = por %p175, %p176
    %p178 = scmp.ne.s32.totalorder %s169, %s170
    %p179 = scmp.eq.s32.totalorder %s18, 0
    %p180 = por %p178, %p179
    %p181 = scmp.ne.s32.totalorder %s169, %s170
    %p182 = scmp.eq.s32.totalorder %s19, 1
    %p183 = por %p181, %p182
    %p185 = scmp.ne.s32.totalorder %s170, %s184
    %p186 = scmp.eq.s32.totalorder %s19, 0
    %p187 = por %p185, %p186
    %s188 = ssub.s32 %s13, %s20
    %p189 = scmp.eq.s32.totalorder %s188, 0
    %s191 = sadd.s32 %s190, 1
    %s192 = scalar_select %p189, %s190, %s191
    %p195 = pneg %p189
    %p196 = scmp.eq.s32.totalorder %s13, 1
    %p197 = por %p195, %p196
    %p198 = scmp.ne.s32.totalorder %s190, %s193
    %p199 = scmp.eq.s32.totalorder %s13, 0
    %p200 = por %p198, %p199
    %p201 = scmp.ne.s32.totalorder %s190, %s193
    %p202 = scmp.eq.s32.totalorder %s18, 1
    %p203 = por %p201, %p202
    %p204 = scmp.ne.s32.totalorder %s193, %s194
    %p205 = scmp.eq.s32.totalorder %s18, 0
    %p206 = por %p204, %p205
    %p207 = scmp.ne.s32.totalorder %s193, %s194
    %p208 = scmp.eq.s32.totalorder %s19, 1
    %p209 = por %p207, %p208
    %p211 = scmp.ne.s32.totalorder %s194, %s210
    %p212 = scmp.eq.s32.totalorder %s19, 0
    %p213 = por %p211, %p212
    %p214 = scmp.le.s32.totalorder 1, %s13
    %p215 = scmp.lt.s32.totalorder %s13, 3
    %p216 = pnand %p214, %p215
    %p217 = pneg %p216
    // Predicated region
    $region9: #{lavt_simple_decode.1} parent=5 // pred_check
      _
    $region10: #{lavt_simple_decode.1} parent=5 // pred_check_branch
      %219 = sbr.rel (%p216) target = $region12
    $region11: #{lavt_simple_decode.1} parent=5 // pred_region
      %s220 = ssub.s32 %s13, 1
      // Predicated region
      $region13: #{lavt_simple_decode.1} parent=11 // pred_check
        %p221 = pneg %p138
      $region14: #{lavt_simple_decode.1} parent=11 // pred_check_branch
        %223 = sbr.rel (%p221) target = $region16
      $region15: #{lavt_simple_decode.1} parent=11 // pred_region
        _
      $region16: #{lavt_simple_decode.1} parent=11 // pred_fallthru
        _
      // Predicated region
      $region17: #{lavt_simple_decode.1} parent=11 // pred_check
        %p224 = pneg %p159
      $region18: #{lavt_simple_decode.1} parent=11 // pred_check_branch
        %226 = sbr.rel (%p224) target = $region20
      $region19: #{lavt_simple_decode.1} parent=11 // pred_region
        _
      $region20: #{lavt_simple_decode.1} parent=11 // pred_fallthru
        _
      // Predicated region
      $region21: #{lavt_simple_decode.1} parent=11 // pred_check
        %p227 = pneg %p180
      $region22: #{lavt_simple_decode.1} parent=11 // pred_check_branch
        %229 = sbr.rel (%p227) target = $region24
      $region23: #{lavt_simple_decode.1} parent=11 // pred_region
        _
      $region24: #{lavt_simple_decode.1} parent=11 // pred_fallthru
        _
    $region12: #{lavt_simple_decode.1} parent=5 // pred_fallthru
      _
    %p230 = scmp.lt.s32.totalorder %s13, 2
    // Predicated region
    $region25: #{lavt_simple_decode.1} parent=5 // pred_check
      %p231 = pneg %p230
    $region26: #{lavt_simple_decode.1} parent=5 // pred_check_branch
      %233 = sbr.rel (%p231) target = $region28
    $region27: #{lavt_simple_decode.1} parent=5 // pred_region
      // Predicated region
      $region29: #{lavt_simple_decode.1} parent=27 // pred_check
        %p234 = pneg %p33
      $region30: #{lavt_simple_decode.1} parent=27 // pred_check_branch
        %236 = sbr.rel (%p234) target = $region32
      $region31: #{lavt_simple_decode.1} parent=27 // pred_region
        %p237 = scmp.lt.s32.totalorder %s13, 1
        %s238 = scalar_select %p237, %s13, 1
        %s239 = smul.addr %s238, 2
        %s240 = smul.addr %s239, 4
        %s241 = scalar_lea.vmem %s0, %s240
      $region32: #{lavt_simple_decode.1} parent=27 // pred_fallthru
        _
      // Predicated region
      $region33: #{lavt_simple_decode.1} parent=27 // pred_check
        %p242 = pneg %p59
      $region34: #{lavt_simple_decode.1} parent=27 // pred_check_branch
        %244 = sbr.rel (%p242) target = $region36
      $region35: #{lavt_simple_decode.1} parent=27 // pred_region
        %p245 = scmp.lt.s32.totalorder %s13, 1
        %s246 = scalar_select %p245, %s13, 1
        %s247 = smul.addr %s246, 4
        %s248 = smul.addr %s247, 8
        %s249 = scalar_lea.vmem %s1, %s248
      $region36: #{lavt_simple_decode.1} parent=27 // pred_fallthru
        _
      // Predicated region
      $region37: #{lavt_simple_decode.1} parent=27 // pred_check
        %p250 = pneg %p85
      $region38: #{lavt_simple_decode.1} parent=27 // pred_check_branch
        %252 = sbr.rel (%p250) target = $region40
      $region39: #{lavt_simple_decode.1} parent=27 // pred_region
        %p253 = scmp.lt.s32.totalorder %s13, 1
        %s254 = scalar_select %p253, %s13, 1
        %s255 = scalar_lea.vmem %s2, %s254
      $region40: #{lavt_simple_decode.1} parent=27 // pred_fallthru
        _
      // Predicated region
      $region41: #{lavt_simple_decode.1} parent=27 // pred_check
        %p256 = pneg %p111
      $region42: #{lavt_simple_decode.1} parent=27 // pred_check_branch
        %258 = sbr.rel (%p256) target = $region44
      $region43: #{lavt_simple_decode.1} parent=27 // pred_region
        %p259 = scmp.lt.s32.totalorder %s13, 1
        %s260 = scalar_select %p259, %s13, 1
        %s261 = smul.addr %s260, 4
        %s262 = smul.addr %s261, 8
        %s263 = scalar_lea.vmem %s3, %s262
      $region44: #{lavt_simple_decode.1} parent=27 // pred_fallthru
        _
    $region28: #{lavt_simple_decode.1} parent=5 // pred_fallthru
      _
    %p264 = scmp.le.s32.totalorder 1, %s13
    %p265 = scmp.lt.s32.totalorder %s13, 3
    %p266 = pnand %p264, %p265
    %p267 = pneg %p266
    // Predicated region
    $region45: #{lavt_simple_decode.1} parent=5 // pred_check
      _
    $region46: #{lavt_simple_decode.1} parent=5 // pred_check_branch
      %269 = sbr.rel (%p266) target = $region48
    $region47: #{lavt_simple_decode.1} parent=5 // pred_region
      %s270 = ssub.s32 %s13, 1
      %p271 = scmp.lt.s32.totalorder %s18, 1
      %s272 = scalar_select %p271, %s18, 1
      %s273 = smul.addr %s272, 2
      %s274 = smul.addr %s273, 4
      %s275 = scalar_lea.vmem %s0, %s274
      %p276 = pneg %p39
      %p277 = pneg %p36
      %p278 = scmp.lt.s32.totalorder %s18, 1
      %s279 = scalar_select %p278, %s18, 1
      %s280 = smul.addr %s279, 4
      %s281 = smul.addr %s280, 8
      %s282 = scalar_lea.vmem %s1, %s281
      %p283 = pneg %p65
      %p284 = pneg %p62
      %p285 = scmp.lt.s32.totalorder %s18, 1
      %s286 = scalar_select %p285, %s18, 1
      %s287 = scalar_lea.vmem %s2, %s286
      %p288 = pneg %p91
      %p289 = pneg %p88
      %p290 = scmp.lt.s32.totalorder %s18, 1
      %s291 = scalar_select %p290, %s18, 1
      %s292 = smul.addr %s291, 4
      %s293 = smul.addr %s292, 8
      %s294 = scalar_lea.vmem %s3, %s293
      %p295 = pneg %p117
      %p296 = pneg %p114
      %p297 = pneg %p138
      %p298 = pneg %p135
      %p299 = pneg %p159
      %p300 = pneg %p156
      %p301 = pneg %p180
      %p302 = pneg %p177
      %p303 = pneg %p206
      %p304 = pneg %p203
      %p305 = scmp.lt.s32.totalorder %s18, 1
      %s306 = scalar_select %p305, %s18, 1
      %s307 = smul.addr %s306, 2
      %s308 = smul.addr %s307, 4
      %s309 = scalar_lea.vmem %s7, %s308
      %p310 = scmp.lt.s32.totalorder %s18, 1
      %s311 = scalar_select %p310, %s18, 1
      %s312 = smul.addr %s311, 2
      %s313 = smul.addr %s312, 4
      %s314 = scalar_lea.vmem %s0, %s313
      %p315 = scmp.lt.s32.totalorder %s18, 1
      %s316 = scalar_select %p315, %s18, 1
      %s317 = smul.addr %s316, 4
      %s318 = smul.addr %s317, 8
      %s319 = scalar_lea.vmem %s1, %s318
      %p320 = scmp.lt.s32.totalorder %s18, 1
      %s321 = scalar_select %p320, %s18, 1
      %s322 = scalar_lea.vmem %s2, %s321
      %p323 = scmp.lt.s32.totalorder %s18, 1
      %s324 = scalar_select %p323, %s18, 1
      %s325 = smul.addr %s324, 4
      %s326 = smul.addr %s325, 8
      %s327 = scalar_lea.vmem %s3, %s326
      %p328 = scmp.lt.s32.totalorder %s18, 1
      %s329 = scalar_select %p328, %s18, 1
      %s330 = smul.addr %s329, 2
      %s331 = smul.addr %s330, 4
      %s332 = scalar_lea.vmem %s7, %s331
      %v333 = vld [vmem:[%s319] sm:$0xff]
      %v334 = vld [vmem:[%s319 + $0x8] sm:$0xff]
      %v335 = vld [vmem:[%s319 + $0x10] sm:$0xff]
      %v336 = vld [vmem:[%s319 + $0x18] sm:$0xff]
      %v337 = vld [vmem:[%s322] sm:$0x1]
      %vm338 = vcmask 57344
      %v339 = vsel %vm338, %v337, 0.0
      %340 = vadd.xlane.f32.xlu0 %v339
      %v341 = vpop.xlane.xlu0 %340
      %v342 = vmax.f32 %v341, 1.0
      %v344 = vperm.slane %v337, 0
      %v346 = vmul.f32 %v333, %v344
      %v347 = vmul.f32 %v334, %v344
      %v348 = vmul.f32 %v335, %v344
      %v349 = vmul.f32 %v336, %v344
      %vm350 = vcmask 64512
      %v351 = vsel %vm350, %v346, 0.0
      %352 = vadd.xlane.f32.xlu0 %v351
      %v353 = vpop.xlane.xlu0 %352
      %v354 = vsel %vm350, %v347, 0.0
      %355 = vadd.xlane.f32.xlu0 %v354
      %v356 = vpop.xlane.xlu0 %355
      %v357 = vsel %vm350, %v348, 0.0
      %358 = vadd.xlane.f32.xlu0 %v357
      %v359 = vpop.xlane.xlu0 %358
      %v360 = vsel %vm350, %v349, 0.0
      %361 = vadd.xlane.f32.xlu0 %v360
      %v362 = vpop.xlane.xlu0 %361
      %v363 = vperm.slane %v342, 0
      %v364 = vrcp.pop %v363
      %v365 = vmul.f32 %v363, %v364
      %v366 = vsub.f32 1.0, %v365
      %v367 = vmul.f32 %v364, %v366
      %v368 = vadd.f32 %v364, %v367
      %vm369 = vweird.f32 %v363
      %vm370 = vweird.f32 %v364
      %vm371 = vmor %vm369, %vm370
      %v372 = vsel %vm371, %v364, %v368
      %v373 = vand.u32 2147483647, %v363
      %vm374 = vcmp.eq.f32.partialorder %v373, 8.507059e+37
      %v375 = vand.u32 %v363, 2147483648
      %v376 = vor.u32 1.1754944e-38, %v375
      %v377 = vsel %vm374, %v376, %v372
      %v378 = vmul.f32 %v353, %v377
      %v379 = vmul.f32 %v356, %v377
      %v380 = vmul.f32 %v359, %v377
      %v381 = vmul.f32 %v362, %v377
      %v382 = vld [vmem:[%s4 + $0x108] sm:$0xff]
      %v383 = vld [vmem:[%s4 + $0x110] sm:$0xff]
      %v384 = vld [vmem:[%s4 + $0x118] sm:$0xff]
      %v385 = vld [vmem:[%s4 + $0x120] sm:$0xff]
      %v386 = vld [vmem:[%s4 + $0x128] sm:$0xff]
      %v387 = vld [vmem:[%s4 + $0x130] sm:$0xff]
      %v388 = vld [vmem:[%s4 + $0x138] sm:$0xff]
      %v389 = vld [vmem:[%s4 + $0x140] sm:$0xff]
      %v390 = vld [vmem:[%s4 + $0x148] sm:$0xff]
      %v391 = vld [vmem:[%s4 + $0x150] sm:$0xff]
      %v392 = vld [vmem:[%s4 + $0x158] sm:$0xff]
      %v393 = vld [vmem:[%s4 + $0x160] sm:$0xff]
      %v394 = vld [vmem:[%s4 + $0x168] sm:$0xff]
      %v395 = vld [vmem:[%s4 + $0x170] sm:$0xff]
      %v396 = vld [vmem:[%s4 + $0x178] sm:$0xff]
      %v397 = vld [vmem:[%s4 + $0x180] sm:$0xff]
      %v398 = vld [vmem:[%s4 + $0x188] sm:$0xff]
      %v399 = vld [vmem:[%s4 + $0x190] sm:$0xff]
      %v400 = vld [vmem:[%s4 + $0x198] sm:$0xff]
      %v401 = vld [vmem:[%s4 + $0x1a0] sm:$0xff]
      %v402 = vld [vmem:[%s4 + $0x1a8] sm:$0xff]
      %v403 = vld [vmem:[%s4 + $0x1b0] sm:$0xff]
      %vm404 = vcmask 261120
      %v406 = vsel %vm404, %v382, 0
      %v409 = vsel %vm404, %v383, 0
      %v412 = vsel %vm404, %v384, 0
      %v415 = vsel %vm404, %v385, 0
      %v418 = vsel %vm404, %v386, 0
      %v421 = vsel %vm404, %v387, 0
      %v424 = vsel %vm404, %v388, 0
      %v427 = vsel %vm404, %v389, 0
      %v430 = vsel %vm404, %v390, 0
      %v433 = vsel %vm404, %v391, 0
      %v436 = vsel %vm404, %v392, 0
      %438 = vmatpush.msra.mxu0 0.0
      %439 = vmatpush.msra.mxu0 0.0
      %440 = vmatpush.msra.mxu0 0.0
      %441 = vmatpush.msra.mxu0 0.0
      %442 = vmatpush.msra.mxu0 0.0
      %443 = vmatpush.msra.mxu0 0.0
      %444 = vmatpush.msra.mxu0 0.0
      %445 = vmatpush.msra.mxu0 0.0
      %446 = vmatpush.msra.mxu0 0.0
      %447 = vmatpush.msra.mxu0 0.0
      %448 = vmatpush.msra.mxu0 0.0
      %449 = vmatpush.msra.mxu0 0.0
      %450 = vmatpush.msra.mxu0 %v381
      %451 = vmatpush.msra.mxu0 %v380
      %452 = vmatpush.msra.mxu0 %v379
      %453 = vmatpush.msra.mxu0 %v378
      %454 = vmatmul.f32.gmra.mxu0 %v406
      %v455 = vpop.f32.mrf.mxu0
      %v456 = vadd.f32 %v393, %v455
      %457 = vmatmul.f32.gmra.mxu0 %v409
      %v458 = vpop.f32.mrf.mxu0
      %v459 = vadd.f32 %v394, %v458
      %460 = vmatmul.f32.gmra.mxu0 %v412
      %v461 = vpop.f32.mrf.mxu0
      %v462 = vadd.f32 %v395, %v461
      %463 = vmatmul.f32.gmra.mxu0 %v415
      %v464 = vpop.f32.mrf.mxu0
      %v465 = vadd.f32 %v396, %v464
      %466 = vmatmul.f32.gmra.mxu0 %v418
      %v467 = vpop.f32.mrf.mxu0
      %v468 = vadd.f32 %v397, %v467
      %469 = vmatmul.f32.gmra.mxu0 %v421
      %v470 = vpop.f32.mrf.mxu0
      %v471 = vadd.f32 %v398, %v470
      %472 = vmatmul.f32.gmra.mxu0 %v424
      %v473 = vpop.f32.mrf.mxu0
      %v474 = vadd.f32 %v399, %v473
      %475 = vmatmul.f32.gmra.mxu0 %v427
      %v476 = vpop.f32.mrf.mxu0
      %v477 = vadd.f32 %v400, %v476
      %478 = vmatmul.f32.gmra.mxu0 %v430
      %v479 = vpop.f32.mrf.mxu0
      %v480 = vadd.f32 %v401, %v479
      %481 = vmatmul.f32.gmra.mxu0 %v433
      %v482 = vpop.f32.mrf.mxu0
      %v483 = vadd.f32 %v402, %v482
      %484 = vmatmul.f32.gmra.mxu0 %v436
      %v485 = vpop.f32.mrf.mxu0
      %v486 = vadd.f32 %v403, %v485
      %487 = vdwg.mxu0
      %v488 = vxor.u32 %v456, 2147483648
      %v489 = vxor.u32 %v459, 2147483648
      %v490 = vxor.u32 %v462, 2147483648
      %v491 = vxor.u32 %v465, 2147483648
      %v492 = vxor.u32 %v468, 2147483648
      %v493 = vxor.u32 %v471, 2147483648
      %v494 = vxor.u32 %v474, 2147483648
      %v495 = vxor.u32 %v477, 2147483648
      %v496 = vxor.u32 %v480, 2147483648
      %v497 = vxor.u32 %v483, 2147483648
      %v498 = vxor.u32 %v486, 2147483648
      %v499 = vmul.f32 %v488, 1.442695
      %v500 = vpow.pop %v499
      %v501 = vmul.f32 %v489, 1.442695
      %v502 = vpow.pop %v501
      %v503 = vmul.f32 %v490, 1.442695
      %v504 = vpow.pop %v503
      %v505 = vmul.f32 %v491, 1.442695
      %v506 = vpow.pop %v505
      %v507 = vmul.f32 %v492, 1.442695
      %v508 = vpow.pop %v507
      %v509 = vmul.f32 %v493, 1.442695
      %v510 = vpow.pop %v509
      %v511 = vmul.f32 %v494, 1.442695
      %v512 = vpow.pop %v511
      %v513 = vmul.f32 %v495, 1.442695
      %v514 = vpow.pop %v513
      %v515 = vmul.f32 %v496, 1.442695
      %v516 = vpow.pop %v515
      %v517 = vmul.f32 %v497, 1.442695
      %v518 = vpow.pop %v517
      %v519 = vmul.f32 %v498, 1.442695
      %v520 = vpow.pop %v519
      %v521 = vadd.f32 %v500, 1.0
      %v522 = vadd.f32 %v502, 1.0
      %v523 = vadd.f32 %v504, 1.0
      %v524 = vadd.f32 %v506, 1.0
      %v525 = vadd.f32 %v508, 1.0
      %v526 = vadd.f32 %v510, 1.0
      %v527 = vadd.f32 %v512, 1.0
      %v528 = vadd.f32 %v514, 1.0
      %v529 = vadd.f32 %v516, 1.0
      %v530 = vadd.f32 %v518, 1.0
      %v531 = vadd.f32 %v520, 1.0
      %v532 = vrcp.pop %v521
      %v533 = vmul.f32 %v521, %v532
      %v534 = vsub.f32 1.0, %v533
      %v535 = vmul.f32 %v532, %v534
      %v536 = vadd.f32 %v532, %v535
      %vm537 = vweird.f32 %v521
      %vm538 = vweird.f32 %v532
      %vm539 = vmor %vm537, %vm538
      %v540 = vsel %vm539, %v532, %v536
      %v541 = vand.u32 2147483647, %v521
      %vm542 = vcmp.eq.f32.partialorder %v541, 8.507059e+37
      %v543 = vand.u32 %v521, 2147483648
      %v544 = vor.u32 1.1754944e-38, %v543
      %v545 = vsel %vm542, %v544, %v540
      %v546 = vmul.f32 1.0, %v545
      %v547 = vrcp.pop %v522
      %v548 = vmul.f32 %v522, %v547
      %v549 = vsub.f32 1.0, %v548
      %v550 = vmul.f32 %v547, %v549
      %v551 = vadd.f32 %v547, %v550
      %vm552 = vweird.f32 %v522
      %vm553 = vweird.f32 %v547
      %vm554 = vmor %vm552, %vm553
      %v555 = vsel %vm554, %v547, %v551
      %v556 = vand.u32 2147483647, %v522
      %vm557 = vcmp.eq.f32.partialorder %v556, 8.507059e+37
      %v558 = vand.u32 %v522, 2147483648
      %v559 = vor.u32 1.1754944e-38, %v558
      %v560 = vsel %vm557, %v559, %v555
      %v561 = vmul.f32 1.0, %v560
      %v562 = vrcp.pop %v523
      %v563 = vmul.f32 %v523, %v562
      %v564 = vsub.f32 1.0, %v563
      %v565 = vmul.f32 %v562, %v564
      %v566 = vadd.f32 %v562, %v565
      %vm567 = vweird.f32 %v523
      %vm568 = vweird.f32 %v562
      %vm569 = vmor %vm567, %vm568
      %v570 = vsel %vm569, %v562, %v566
      %v571 = vand.u32 2147483647, %v523
      %vm572 = vcmp.eq.f32.partialorder %v571, 8.507059e+37
      %v573 = vand.u32 %v523, 2147483648
      %v574 = vor.u32 1.1754944e-38, %v573
      %v575 = vsel %vm572, %v574, %v570
      %v576 = vmul.f32 1.0, %v575
      %v577 = vrcp.pop %v524
      %v578 = vmul.f32 %v524, %v577
      %v579 = vsub.f32 1.0, %v578
      %v580 = vmul.f32 %v577, %v579
      %v581 = vadd.f32 %v577, %v580
      %vm582 = vweird.f32 %v524
      %vm583 = vweird.f32 %v577
      %vm584 = vmor %vm582, %vm583
      %v585 = vsel %vm584, %v577, %v581
      %v586 = vand.u32 2147483647, %v524
      %vm587 = vcmp.eq.f32.partialorder %v586, 8.507059e+37
      %v588 = vand.u32 %v524, 2147483648
      %v589 = vor.u32 1.1754944e-38, %v588
      %v590 = vsel %vm587, %v589, %v585
      %v591 = vmul.f32 1.0, %v590
      %v592 = vrcp.pop %v525
      %v593 = vmul.f32 %v525, %v592
      %v594 = vsub.f32 1.0, %v593
      %v595 = vmul.f32 %v592, %v594
      %v596 = vadd.f32 %v592, %v595
      %vm597 = vweird.f32 %v525
      %vm598 = vweird.f32 %v592
      %vm599 = vmor %vm597, %vm598
      %v600 = vsel %vm599, %v592, %v596
      %v601 = vand.u32 2147483647, %v525
      %vm602 = vcmp.eq.f32.partialorder %v601, 8.507059e+37
      %v603 = vand.u32 %v525, 2147483648
      %v604 = vor.u32 1.1754944e-38, %v603
      %v605 = vsel %vm602, %v604, %v600
      %v606 = vmul.f32 1.0, %v605
      %v607 = vrcp.pop %v526
      %v608 = vmul.f32 %v526, %v607
      %v609 = vsub.f32 1.0, %v608
      %v610 = vmul.f32 %v607, %v609
      %v611 = vadd.f32 %v607, %v610
      %vm612 = vweird.f32 %v526
      %vm613 = vweird.f32 %v607
      %vm614 = vmor %vm612, %vm613
      %v615 = vsel %vm614, %v607, %v611
      %v616 = vand.u32 2147483647, %v526
      %vm617 = vcmp.eq.f32.partialorder %v616, 8.507059e+37
      %v618 = vand.u32 %v526, 2147483648
      %v619 = vor.u32 1.1754944e-38, %v618
      %v620 = vsel %vm617, %v619, %v615
      %v621 = vmul.f32 1.0, %v620
      %v622 = vrcp.pop %v527
      %v623 = vmul.f32 %v527, %v622
      %v624 = vsub.f32 1.0, %v623
      %v625 = vmul.f32 %v622, %v624
      %v626 = vadd.f32 %v622, %v625
      %vm627 = vweird.f32 %v527
      %vm628 = vweird.f32 %v622
      %vm629 = vmor %vm627, %vm628
      %v630 = vsel %vm629, %v622, %v626
      %v631 = vand.u32 2147483647, %v527
      %vm632 = vcmp.eq.f32.partialorder %v631, 8.507059e+37
      %v633 = vand.u32 %v527, 2147483648
      %v634 = vor.u32 1.1754944e-38, %v633
      %v635 = vsel %vm632, %v634, %v630
      %v636 = vmul.f32 1.0, %v635
      %v637 = vrcp.pop %v528
      %v638 = vmul.f32 %v528, %v637
      %v639 = vsub.f32 1.0, %v638
      %v640 = vmul.f32 %v637, %v639
      %v641 = vadd.f32 %v637, %v640
      %vm642 = vweird.f32 %v528
      %vm643 = vweird.f32 %v637
      %vm644 = vmor %vm642, %vm643
      %v645 = vsel %vm644, %v637, %v641
      %v646 = vand.u32 2147483647, %v528
      %vm647 = vcmp.eq.f32.partialorder %v646, 8.507059e+37
      %v648 = vand.u32 %v528, 2147483648
      %v649 = vor.u32 1.1754944e-38, %v648
      %v650 = vsel %vm647, %v649, %v645
      %v651 = vmul.f32 1.0, %v650
      %v652 = vrcp.pop %v529
      %v653 = vmul.f32 %v529, %v652
      %v654 = vsub.f32 1.0, %v653
      %v655 = vmul.f32 %v652, %v654
      %v656 = vadd.f32 %v652, %v655
      %vm657 = vweird.f32 %v529
      %vm658 = vweird.f32 %v652
      %vm659 = vmor %vm657, %vm658
      %v660 = vsel %vm659, %v652, %v656
      %v661 = vand.u32 2147483647, %v529
      %vm662 = vcmp.eq.f32.partialorder %v661, 8.507059e+37
      %v663 = vand.u32 %v529, 2147483648
      %v664 = vor.u32 1.1754944e-38, %v663
      %v665 = vsel %vm662, %v664, %v660
      %v666 = vmul.f32 1.0, %v665
      %v667 = vrcp.pop %v530
      %v668 = vmul.f32 %v530, %v667
      %v669 = vsub.f32 1.0, %v668
      %v670 = vmul.f32 %v667, %v669
      %v671 = vadd.f32 %v667, %v670
      %vm672 = vweird.f32 %v530
      %vm673 = vweird.f32 %v667
      %vm674 = vmor %vm672, %vm673
      %v675 = vsel %vm674, %v667, %v671
      %v676 = vand.u32 2147483647, %v530
      %vm677 = vcmp.eq.f32.partialorder %v676, 8.507059e+37
      %v678 = vand.u32 %v530, 2147483648
      %v679 = vor.u32 1.1754944e-38, %v678
      %v680 = vsel %vm677, %v679, %v675
      %v681 = vmul.f32 1.0, %v680
      %v682 = vrcp.pop %v531
      %v683 = vmul.f32 %v531, %v682
      %v684 = vsub.f32 1.0, %v683
      %v685 = vmul.f32 %v682, %v684
      %v686 = vadd.f32 %v682, %v685
      %vm687 = vweird.f32 %v531
      %vm688 = vweird.f32 %v682
      %vm689 = vmor %vm687, %vm688
      %v690 = vsel %vm689, %v682, %v686
      %v691 = vand.u32 2147483647, %v531
      %vm692 = vcmp.eq.f32.partialorder %v691, 8.507059e+37
      %v693 = vand.u32 %v531, 2147483648
      %v694 = vor.u32 1.1754944e-38, %v693
      %v695 = vsel %vm692, %v694, %v690
      %v696 = vmul.f32 1.0, %v695
      %v697 = vld [vmem:[%s314] sm:$0xff]
      %v698 = vld [vmem:[%s4 + $0x58] sm:$0xff]
      %v699 = vld [vmem:[%s4 + $0xb0] sm:$0xff]
      %701 = vset.pattern.permute.xlu0 0
      %702 = vperm.xlu0 %701, %v699
      %v703 = vpop.permute.xlu0 %702
      %706 = vst [vmem:[#allocation1] ss:$2 sm:$0xff] %v697
      %v707 = vld.sshfl [vmem:[#allocation1] sm:$0xff pattern:$0x75316420]
      %v708 = vld.sshfl [vmem:[#allocation1 + $0x8] sm:$0xff pattern:$0x75316420]
      %vm709 = vcmask 31744
      %v711 = vsel %vm709, %v698, 0
      %vm713 = vcmask 1043456
      %v714 = vsel %vm713, %v707, 0
      %v716 = vsel %vm713, %v708, 0
      %718 = vmatpush.msra.mxu0 0.0
      %719 = vmatpush.msra.mxu0 0.0
      %720 = vmatpush.msra.mxu0 0.0
      %721 = vmatpush.msra.mxu0 0.0
      %722 = vmatpush.msra.mxu0 0.0
      %723 = vmatpush.msra.mxu0 0.0
      %724 = vmatpush.msra.mxu0 0.0
      %725 = vmatpush.msra.mxu0 0.0
      %726 = vmatpush.msra.mxu0 0.0
      %727 = vmatpush.msra.mxu0 0.0
      %728 = vmatpush.msra.mxu0 0.0
      %729 = vmatpush.msra.mxu0 0.0
      %730 = vmatpush.msra.mxu0 0.0
      %731 = vmatpush.msra.mxu0 0.0
      %732 = vmatpush.msra.mxu0 0.0
      %733 = vmatpush.msra.mxu0 %v714
      %734 = vmatmul.f32.gmra.mxu0 %v711
      %v735 = vpop.f32.mrf.mxu0
      %v736 = vadd.f32 %v703, %v735
      %737 = vdwg.mxu0
      %738 = vmatpush.msra.mxu0 0.0
      %739 = vmatpush.msra.mxu0 0.0
      %740 = vmatpush.msra.mxu0 0.0
      %741 = vmatpush.msra.mxu0 0.0
      %742 = vmatpush.msra.mxu0 0.0
      %743 = vmatpush.msra.mxu0 0.0
      %744 = vmatpush.msra.mxu0 0.0
      %745 = vmatpush.msra.mxu0 0.0
      %746 = vmatpush.msra.mxu0 0.0
      %747 = vmatpush.msra.mxu0 0.0
      %748 = vmatpush.msra.mxu0 0.0
      %749 = vmatpush.msra.mxu0 0.0
      %750 = vmatpush.msra.mxu0 0.0
      %751 = vmatpush.msra.mxu0 0.0
      %752 = vmatpush.msra.mxu0 0.0
      %753 = vmatpush.msra.mxu0 %v716
      %754 = vmatmul.f32.gmra.mxu0 %v711
      %v755 = vpop.f32.mrf.mxu0
      %v756 = vadd.f32 %v703, %v755
      %757 = vdwg.mxu0
      %v758 = vmax.f32 %v736, 0.0
      %v759 = vmax.f32 %v756, 0.0
      %761 = vset.pattern.permute.xlu0 0
      %762 = vperm.xlu0 %761, %v546
      %v763 = vpop.permute.xlu0 %762
      %v765 = vmul.f32 %v758, %v763
      %v766 = vmul.f32 %v759, %v763
      %v767 = vld [vmem:[%s5] sm:$0xff]
      %v768 = vld [vmem:[%s5 + $0x8] sm:$0xff]
      %v769 = vld [vmem:[%s5 + $0x10] sm:$0xff]
      %v770 = vld [vmem:[%s5 + $0x18] sm:$0xff]
      %v771 = vld [vmem:[%s5 + $0x20] sm:$0xff]
      %v772 = vld [vmem:[%s5 + $0x28] sm:$0xff]
      %v773 = vld [vmem:[%s5 + $0x30] sm:$0xff]
      %v774 = vld [vmem:[%s5 + $0x38] sm:$0xff]
      %v775 = vld [vmem:[%s5 + $0x40] sm:$0xff]
      %v776 = vld [vmem:[%s5 + $0x48] sm:$0xff]
      %v777 = vld [vmem:[%s5 + $0x50] sm:$0xff]
      %v778 = vld [vmem:[%s5 + $0x58] sm:$0xff]
      %v779 = vld [vmem:[%s5 + $0x60] sm:$0xff]
      %v780 = vld [vmem:[%s5 + $0x68] sm:$0xff]
      %v781 = vld [vmem:[%s5 + $0x70] sm:$0xff]
      %v782 = vld [vmem:[%s5 + $0x78] sm:$0xff]
      %v783 = vld [vmem:[%s5 + $0x80] sm:$0xff]
      %v784 = vld [vmem:[%s5 + $0x88] sm:$0xff]
      %v785 = vld [vmem:[%s5 + $0x90] sm:$0xff]
      %v786 = vld [vmem:[%s5 + $0x98] sm:$0xff]
      %v787 = vld [vmem:[%s5 + $0xa0] sm:$0xff]
      %v788 = vld [vmem:[%s5 + $0xa8] sm:$0xff]
      %v789 = vld [vmem:[%s5 + $0xb0] sm:$0xff]
      %v790 = vld [vmem:[%s5 + $0xb8] sm:$0xff]
      %v791 = vld [vmem:[%s5 + $0xc0] sm:$0xff]
      %v792 = vld [vmem:[%s5 + $0xc8] sm:$0xff]
      %v793 = vld [vmem:[%s5 + $0xd0] sm:$0xff]
      %v794 = vld [vmem:[%s5 + $0xd8] sm:$0xff]
      %v795 = vld [vmem:[%s5 + $0xe0] sm:$0xff]
      %v796 = vld [vmem:[%s5 + $0xe8] sm:$0xff]
      %v797 = vld [vmem:[%s5 + $0xf0] sm:$0xff]
      %v798 = vld [vmem:[%s5 + $0xf8] sm:$0xff]
      %799 = vmatpush.msra.mxu0 %v782
      %800 = vmatpush.msra.mxu0 %v781
      %801 = vmatpush.msra.mxu0 %v780
      %802 = vmatpush.msra.mxu0 %v779
      %803 = vmatpush.msra.mxu0 %v778
      %804 = vmatpush.msra.mxu0 %v777
      %805 = vmatpush.msra.mxu0 %v776
      %806 = vmatpush.msra.mxu0 %v775
      %807 = vmatpush.msra.mxu0 %v774
      %808 = vmatpush.msra.mxu0 %v773
      %809 = vmatpush.msra.mxu0 %v772
      %810 = vmatpush.msra.mxu0 %v771
      %811 = vmatpush.msra.mxu0 %v770
      %812 = vmatpush.msra.mxu0 %v769
      %813 = vmatpush.msra.mxu0 %v768
      %814 = vmatpush.msra.mxu0 %v767
      %815 = vmatmul.f32.gmra.mxu0 %v765
      %v816 = vpop.f32.mrf.mxu0
      %v817 = vadd.f32 0.0, %v816
      %818 = vdwg.mxu0
      %819 = vmatpush.msra.mxu0 %v798
      %820 = vmatpush.msra.mxu0 %v797
      %821 = vmatpush.msra.mxu0 %v796
      %822 = vmatpush.msra.mxu0 %v795
      %823 = vmatpush.msra.mxu0 %v794
      %824 = vmatpush.msra.mxu0 %v793
      %825 = vmatpush.msra.mxu0 %v792
      %826 = vmatpush.msra.mxu0 %v791
      %827 = vmatpush.msra.mxu0 %v790
      %828 = vmatpush.msra.mxu0 %v789
      %829 = vmatpush.msra.mxu0 %v788
      %830 = vmatpush.msra.mxu0 %v787
      %831 = vmatpush.msra.mxu0 %v786
      %832 = vmatpush.msra.mxu0 %v785
      %833 = vmatpush.msra.mxu0 %v784
      %834 = vmatpush.msra.mxu0 %v783
      %835 = vmatmul.f32.gmra.mxu0 %v766
      %v836 = vpop.f32.mrf.mxu0
      %v837 = vadd.f32 %v817, %v836
      %838 = vdwg.mxu0
      %v839 = vld [vmem:[%s4 + $0x60] sm:$0xff]
      %v840 = vld [vmem:[%s4 + $0x68] sm:$0xff]
      %v841 = vld [vmem:[%s4 + $0xb8] sm:$0xff]
      %v842 = vld [vmem:[%s4 + $0xc0] sm:$0xff]
      %844 = vset.pattern.permute.xlu0 0
      %845 = vperm.xlu0 %844, %v841
      %v846 = vpop.permute.xlu0 %845
      %849 = vset.pattern.permute.xlu0 0
      %850 = vperm.xlu0 %849, %v842
      %v851 = vpop.permute.xlu0 %850
      %v854 = vsel %vm350, %v839, 0
      %v857 = vsel %vm350, %v840, 0
      %859 = vmatpush.msra.mxu0 0.0
      %860 = vmatpush.msra.mxu0 0.0
      %861 = vmatpush.msra.mxu0 0.0
      %862 = vmatpush.msra.mxu0 0.0
      %863 = vmatpush.msra.mxu0 0.0
      %864 = vmatpush.msra.mxu0 0.0
      %865 = vmatpush.msra.mxu0 0.0
      %866 = vmatpush.msra.mxu0 0.0
      %867 = vmatpush.msra.mxu0 0.0
      %868 = vmatpush.msra.mxu0 0.0
      %869 = vmatpush.msra.mxu0 0.0
      %870 = vmatpush.msra.mxu0 0.0
      %871 = vmatpush.msra.mxu0 0.0
      %872 = vmatpush.msra.mxu0 0.0
      %873 = vmatpush.msra.mxu0 0.0
      %874 = vmatpush.msra.mxu0 %v837
      %875 = vmatmul.f32.gmra.mxu0 %v854
      %v876 = vpop.f32.mrf.mxu0
      %v877 = vadd.f32 %v846, %v876
      %878 = vmatmul.f32.gmra.mxu0 %v857
      %v879 = vpop.f32.mrf.mxu0
      %v880 = vadd.f32 %v851, %v879
      %881 = vdwg.mxu0
      %v882 = vmax.f32 %v877, 0.0
      %v883 = vmax.f32 %v880, 0.0
      %885 = vset.pattern.permute.xlu0 0
      %886 = vperm.xlu0 %885, %v561
      %v887 = vpop.permute.xlu0 %886
      %890 = vset.pattern.permute.xlu0 0
      %891 = vperm.xlu0 %890, %v576
      %v892 = vpop.permute.xlu0 %891
      %v894 = vmul.f32 %v882, %v887
      %v895 = vmul.f32 %v883, %v892
      %v896 = vld [vmem:[%s4] sm:$0xff]
      %v897 = vld [vmem:[%s4 + $0x8] sm:$0xff]
      %v898 = vld [vmem:[%s4 + $0x10] sm:$0xff]
      %v899 = vld [vmem:[%s4 + $0x18] sm:$0xff]
      %v900 = vld [vmem:[%s4 + $0x20] sm:$0xff]
      %v901 = vld [vmem:[%s4 + $0x28] sm:$0xff]
      %v902 = vld [vmem:[%s4 + $0x30] sm:$0xff]
      %v903 = vld [vmem:[%s4 + $0x38] sm:$0xff]
      %vm904 = vcmask 523264
      %v906 = vsel %vm904, %v894, 0
      %v909 = vsel %vm904, %v895, 0
      %911 = vmatpush.msra.mxu0 0.0
      %912 = vmatpush.msra.mxu0 0.0
      %913 = vmatpush.msra.mxu0 0.0
      %914 = vmatpush.msra.mxu0 0.0
      %915 = vmatpush.msra.mxu0 0.0
      %916 = vmatpush.msra.mxu0 0.0
      %917 = vmatpush.msra.mxu0 0.0
      %918 = vmatpush.msra.mxu0 0.0
      %919 = vmatpush.msra.mxu0 %v903
      %920 = vmatpush.msra.mxu0 %v902
      %921 = vmatpush.msra.mxu0 %v901
      %922 = vmatpush.msra.mxu0 %v900
      %923 = vmatpush.msra.mxu0 %v899
      %924 = vmatpush.msra.mxu0 %v898
      %925 = vmatpush.msra.mxu0 %v897
      %926 = vmatpush.msra.mxu0 %v896
      %927 = vmatmul.f32.gmra.mxu0 %v906
      %v928 = vpop.f32.mrf.mxu0
      %v929 = vadd.f32 0.0, %v928
      %930 = vmatmul.f32.gmra.mxu0 %v909
      %v931 = vpop.f32.mrf.mxu0
      %v932 = vadd.f32 0.0, %v931
      %933 = vdwg.mxu0
      %v934 = vld [vmem:[%s4 + $0x70] sm:$0xff]
      %v935 = vld [vmem:[%s4 + $0x78] sm:$0xff]
      %v936 = vld [vmem:[%s4 + $0x80] sm:$0xff]
      %v937 = vld [vmem:[%s4 + $0x88] sm:$0xff]
      %v938 = vld [vmem:[%s4 + $0xc8] sm:$0xff]
      %v939 = vld [vmem:[%s4 + $0xd0] sm:$0xff]
      %v940 = vld [vmem:[%s4 + $0xd8] sm:$0xff]
      %v941 = vld [vmem:[%s4 + $0xe0] sm:$0xff]
      %943 = vset.pattern.permute.xlu0 0
      %944 = vperm.xlu0 %943, %v938
      %v945 = vpop.permute.xlu0 %944
      %948 = vset.pattern.permute.xlu0 0
      %949 = vperm.xlu0 %948, %v939
      %v950 = vpop.permute.xlu0 %949
      %953 = vset.pattern.permute.xlu0 0
      %954 = vperm.xlu0 %953, %v940
      %v955 = vpop.permute.xlu0 %954
      %958 = vset.pattern.permute.xlu0 0
      %959 = vperm.xlu0 %958, %v941
      %v960 = vpop.permute.xlu0 %959
      %vm962 = vcmask 130048
      %v964 = vsel %vm962, %v934, 0
      %v967 = vsel %vm962, %v935, 0
      %v970 = vsel %vm962, %v936, 0
      %v973 = vsel %vm962, %v937, 0
      %975 = vmatpush.msra.mxu0 0.0
      %976 = vmatpush.msra.mxu0 0.0
      %977 = vmatpush.msra.mxu0 0.0
      %978 = vmatpush.msra.mxu0 0.0
      %979 = vmatpush.msra.mxu0 0.0
      %980 = vmatpush.msra.mxu0 0.0
      %981 = vmatpush.msra.mxu0 0.0
      %982 = vmatpush.msra.mxu0 0.0
      %983 = vmatpush.msra.mxu0 0.0
      %984 = vmatpush.msra.mxu0 0.0
      %985 = vmatpush.msra.mxu0 0.0
      %986 = vmatpush.msra.mxu0 0.0
      %987 = vmatpush.msra.mxu0 0.0
      %988 = vmatpush.msra.mxu0 0.0
      %989 = vmatpush.msra.mxu0 %v932
      %990 = vmatpush.msra.mxu0 %v929
      %991 = vmatmul.f32.gmra.mxu0 %v964
      %v992 = vpop.f32.mrf.mxu0
      %v993 = vadd.f32 %v945, %v992
      %994 = vmatmul.f32.gmra.mxu0 %v967
      %v995 = vpop.f32.mrf.mxu0
      %v996 = vadd.f32 %v950, %v995
      %997 = vmatmul.f32.gmra.mxu0 %v970
      %v998 = vpop.f32.mrf.mxu0
      %v999 = vadd.f32 %v955, %v998
      %1000 = vmatmul.f32.gmra.mxu0 %v973
      %v1001 = vpop.f32.mrf.mxu0
      %v1002 = vadd.f32 %v960, %v1001
      %1003 = vdwg.mxu0
      %v1004 = vmax.f32 %v993, 0.0
      %v1005 = vmax.f32 %v996, 0.0
      %v1006 = vmax.f32 %v999, 0.0
      %v1007 = vmax.f32 %v1002, 0.0
      %1009 = vset.pattern.permute.xlu0 0
      %1010 = vperm.xlu0 %1009, %v591
      %v1011 = vpop.permute.xlu0 %1010
      %1014 = vset.pattern.permute.xlu0 0
      %1015 = vperm.xlu0 %1014, %v606
      %v1016 = vpop.permute.xlu0 %1015
      %1019 = vset.pattern.permute.xlu0 0
      %1020 = vperm.xlu0 %1019, %v621
      %v1021 = vpop.permute.xlu0 %1020
      %1024 = vset.pattern.permute.xlu0 0
      %1025 = vperm.xlu0 %1024, %v636
      %v1026 = vpop.permute.xlu0 %1025
      %v1028 = vmul.f32 %v1004, %v1011
      %v1029 = vmul.f32 %v1005, %v1016
      %v1030 = vmul.f32 %v1006, %v1021
      %v1031 = vmul.f32 %v1007, %v1026
      %v1032 = vld [vmem:[%s4 + $0x40] sm:$0xff]
      %v1033 = vld [vmem:[%s4 + $0x48] sm:$0xff]
      %v1035 = vsel %vm962, %v1028, 0
      %v1038 = vsel %vm962, %v1029, 0
      %v1041 = vsel %vm962, %v1030, 0
      %v1044 = vsel %vm962, %v1031, 0
      %1046 = vmatpush.msra.mxu0 0.0
      %1047 = vmatpush.msra.mxu0 0.0
      %1048 = vmatpush.msra.mxu0 0.0
      %1049 = vmatpush.msra.mxu0 0.0
      %1050 = vmatpush.msra.mxu0 0.0
      %1051 = vmatpush.msra.mxu0 0.0
      %1052 = vmatpush.msra.mxu0 0.0
      %1053 = vmatpush.msra.mxu0 0.0
      %1054 = vmatpush.msra.mxu0 0.0
      %1055 = vmatpush.msra.mxu0 0.0
      %1056 = vmatpush.msra.mxu0 0.0
      %1057 = vmatpush.msra.mxu0 0.0
      %1058 = vmatpush.msra.mxu0 0.0
      %1059 = vmatpush.msra.mxu0 0.0
      %1060 = vmatpush.msra.mxu0 %v1033
      %1061 = vmatpush.msra.mxu0 %v1032
      %1062 = vmatmul.f32.gmra.mxu0 %v1035
      %v1063 = vpop.f32.mrf.mxu0
      %v1064 = vadd.f32 0.0, %v1063
      %1065 = vmatmul.f32.gmra.mxu0 %v1038
      %v1066 = vpop.f32.mrf.mxu0
      %v1067 = vadd.f32 0.0, %v1066
      %1068 = vmatmul.f32.gmra.mxu0 %v1041
      %v1069 = vpop.f32.mrf.mxu0
      %v1070 = vadd.f32 0.0, %v1069
      %1071 = vmatmul.f32.gmra.mxu0 %v1044
      %v1072 = vpop.f32.mrf.mxu0
      %v1073 = vadd.f32 0.0, %v1072
      %1074 = vdwg.mxu0
      %v1075 = vld [vmem:[%s4 + $0x90] sm:$0xff]
      %v1076 = vld [vmem:[%s4 + $0x98] sm:$0xff]
      %v1077 = vld [vmem:[%s4 + $0xa0] sm:$0xff]
      %v1078 = vld [vmem:[%s4 + $0xa8] sm:$0xff]
      %v1079 = vld [vmem:[%s4 + $0xe8] sm:$0xff]
      %v1080 = vld [vmem:[%s4 + $0xf0] sm:$0xff]
      %v1081 = vld [vmem:[%s4 + $0xf8] sm:$0xff]
      %v1082 = vld [vmem:[%s4 + $0x100] sm:$0xff]
      %1084 = vset.pattern.permute.xlu0 0
      %1085 = vperm.xlu0 %1084, %v1079
      %v1086 = vpop.permute.xlu0 %1085
      %1089 = vset.pattern.permute.xlu0 0
      %1090 = vperm.xlu0 %1089, %v1080
      %v1091 = vpop.permute.xlu0 %1090
      %1094 = vset.pattern.permute.xlu0 0
      %1095 = vperm.xlu0 %1094, %v1081
      %v1096 = vpop.permute.xlu0 %1095
      %1099 = vset.pattern.permute.xlu0 0
      %1100 = vperm.xlu0 %1099, %v1082
      %v1101 = vpop.permute.xlu0 %1100
      %v1104 = vsel %vm404, %v1075, 0
      %v1107 = vsel %vm404, %v1076, 0
      %v1110 = vsel %vm404, %v1077, 0
      %v1113 = vsel %vm404, %v1078, 0
      %1115 = vmatpush.msra.mxu0 0.0
      %1116 = vmatpush.msra.mxu0 0.0
      %1117 = vmatpush.msra.mxu0 0.0
      %1118 = vmatpush.msra.mxu0 0.0
      %1119 = vmatpush.msra.mxu0 0.0
      %1120 = vmatpush.msra.mxu0 0.0
      %1121 = vmatpush.msra.mxu0 0.0
      %1122 = vmatpush.msra.mxu0 0.0
      %1123 = vmatpush.msra.mxu0 0.0
      %1124 = vmatpush.msra.mxu0 0.0
      %1125 = vmatpush.msra.mxu0 0.0
      %1126 = vmatpush.msra.mxu0 0.0
      %1127 = vmatpush.msra.mxu0 %v1073
      %1128 = vmatpush.msra.mxu0 %v1070
      %1129 = vmatpush.msra.mxu0 %v1067
      %1130 = vmatpush.msra.mxu0 %v1064
      %1131 = vmatmul.f32.gmra.mxu0 %v1104
      %v1132 = vpop.f32.mrf.mxu0
      %v1133 = vadd.f32 %v1086, %v1132
      %1134 = vmatmul.f32.gmra.mxu0 %v1107
      %v1135 = vpop.f32.mrf.mxu0
      %v1136 = vadd.f32 %v1091, %v1135
      %1137 = vmatmul.f32.gmra.mxu0 %v1110
      %v1138 = vpop.f32.mrf.mxu0
      %v1139 = vadd.f32 %v1096, %v1138
      %1140 = vmatmul.f32.gmra.mxu0 %v1113
      %v1141 = vpop.f32.mrf.mxu0
      %v1142 = vadd.f32 %v1101, %v1141
      %1143 = vdwg.mxu0
      %v1144 = vmax.f32 %v1133, 0.0
      %v1145 = vmax.f32 %v1136, 0.0
      %v1146 = vmax.f32 %v1139, 0.0
      %v1147 = vmax.f32 %v1142, 0.0
      %1149 = vset.pattern.permute.xlu0 0
      %1150 = vperm.xlu0 %1149, %v651
      %v1151 = vpop.permute.xlu0 %1150
      %1154 = vset.pattern.permute.xlu0 0
      %1155 = vperm.xlu0 %1154, %v666
      %v1156 = vpop.permute.xlu0 %1155
      %1159 = vset.pattern.permute.xlu0 0
      %1160 = vperm.xlu0 %1159, %v681
      %v1161 = vpop.permute.xlu0 %1160
      %1164 = vset.pattern.permute.xlu0 0
      %1165 = vperm.xlu0 %1164, %v696
      %v1166 = vpop.permute.xlu0 %1165
      %v1168 = vmul.f32 %v1144, %v1151
      %v1169 = vmul.f32 %v1145, %v1156
      %v1170 = vmul.f32 %v1146, %v1161
      %v1171 = vmul.f32 %v1147, %v1166
      %v1172 = vld [vmem:[%s4 + $0x50] sm:$0xf]
      %v1173 = vld [vmem:[%s4 + $0x1b8] sm:$0xff]
      %v1174 = vld [vmem:[%s4 + $0x1c0] sm:$0xff]
      %v1175 = vld [vmem:[%s4 + $0x1c8] sm:$0xff]
      %v1176 = vld [vmem:[%s4 + $0x1d0] sm:$0xff]
      %v1178 = vsel %vm404, %v1173, 0
      %v1181 = vsel %vm404, %v1174, 0
      %v1184 = vsel %vm404, %v1175, 0
      %v1187 = vsel %vm404, %v1176, 0
      %1189 = vmatpush.msra.mxu0 0.0
      %1190 = vmatpush.msra.mxu0 0.0
      %1191 = vmatpush.msra.mxu0 0.0
      %1192 = vmatpush.msra.mxu0 0.0
      %1193 = vmatpush.msra.mxu0 0.0
      %1194 = vmatpush.msra.mxu0 0.0
      %1195 = vmatpush.msra.mxu0 0.0
      %1196 = vmatpush.msra.mxu0 0.0
      %1197 = vmatpush.msra.mxu0 0.0
      %1198 = vmatpush.msra.mxu0 0.0
      %1199 = vmatpush.msra.mxu0 0.0
      %1200 = vmatpush.msra.mxu0 0.0
      %1201 = vmatpush.msra.mxu0 %v1171
      %1202 = vmatpush.msra.mxu0 %v1170
      %1203 = vmatpush.msra.mxu0 %v1169
      %1204 = vmatpush.msra.mxu0 %v1168
      %1205 = vmatmul.f32.gmra.mxu0 %v1178
      %v1206 = vpop.f32.mrf.mxu0
      %v1207 = vadd.f32 0.0, %v1206
      %1208 = vmatmul.f32.gmra.mxu0 %v1181
      %v1209 = vpop.f32.mrf.mxu0
      %v1210 = vadd.f32 0.0, %v1209
      %1211 = vmatmul.f32.gmra.mxu0 %v1184
      %v1212 = vpop.f32.mrf.mxu0
      %v1213 = vadd.f32 0.0, %v1212
      %1214 = vmatmul.f32.gmra.mxu0 %v1187
      %v1215 = vpop.f32.mrf.mxu0
      %v1216 = vadd.f32 0.0, %v1215
      %1217 = vdwg.mxu0
      %v1218 = vld [vmem:[%s4 + $0x1d8] sm:$0xff]
      %v1219 = vld [vmem:[%s4 + $0x1e0] sm:$0xff]
      %v1220 = vld [vmem:[%s4 + $0x1e8] sm:$0xff]
      %v1221 = vld [vmem:[%s4 + $0x1f0] sm:$0xff]
      %v1223 = vsel %vm404, %v1218, 0
      %v1226 = vsel %vm404, %v1219, 0
      %v1229 = vsel %vm404, %v1220, 0
      %v1232 = vsel %vm404, %v1221, 0
      %1234 = vmatpush.msra.mxu0 0.0
      %1235 = vmatpush.msra.mxu0 0.0
      %1236 = vmatpush.msra.mxu0 0.0
      %1237 = vmatpush.msra.mxu0 0.0
      %1238 = vmatpush.msra.mxu0 0.0
      %1239 = vmatpush.msra.mxu0 0.0
      %1240 = vmatpush.msra.mxu0 0.0
      %1241 = vmatpush.msra.mxu0 0.0
      %1242 = vmatpush.msra.mxu0 0.0
      %1243 = vmatpush.msra.mxu0 0.0
      %1244 = vmatpush.msra.mxu0 0.0
      %1245 = vmatpush.msra.mxu0 0.0
      %1246 = vmatpush.msra.mxu0 %v1031
      %1247 = vmatpush.msra.mxu0 %v1030
      %1248 = vmatpush.msra.mxu0 %v1029
      %1249 = vmatpush.msra.mxu0 %v1028
      %1250 = vmatmul.f32.gmra.mxu0 %v1223
      %v1251 = vpop.f32.mrf.mxu0
      %v1252 = vadd.f32 0.0, %v1251
      %1253 = vmatmul.f32.gmra.mxu0 %v1226
      %v1254 = vpop.f32.mrf.mxu0
      %v1255 = vadd.f32 0.0, %v1254
      %1256 = vmatmul.f32.gmra.mxu0 %v1229
      %v1257 = vpop.f32.mrf.mxu0
      %v1258 = vadd.f32 0.0, %v1257
      %1259 = vmatmul.f32.gmra.mxu0 %v1232
      %v1260 = vpop.f32.mrf.mxu0
      %v1261 = vadd.f32 0.0, %v1260
      %1262 = vdwg.mxu0
      %v1264 = vsel %vm709, %v1207, 0
      %v1267 = vsel %vm709, %v1210, 0
      %v1270 = vsel %vm709, %v1213, 0
      %v1273 = vsel %vm709, %v1216, 0
      %v1276 = vsel %vm713, %v1172, 0
      %1278 = vmatpush.msra.mxu0 0.0
      %1279 = vmatpush.msra.mxu0 0.0
      %1280 = vmatpush.msra.mxu0 0.0
      %1281 = vmatpush.msra.mxu0 0.0
      %1282 = vmatpush.msra.mxu0 0.0
      %1283 = vmatpush.msra.mxu0 0.0
      %1284 = vmatpush.msra.mxu0 0.0
      %1285 = vmatpush.msra.mxu0 0.0
      %1286 = vmatpush.msra.mxu0 0.0
      %1287 = vmatpush.msra.mxu0 0.0
      %1288 = vmatpush.msra.mxu0 0.0
      %1289 = vmatpush.msra.mxu0 0.0
      %1290 = vmatpush.msra.mxu0 0.0
      %1291 = vmatpush.msra.mxu0 0.0
      %1292 = vmatpush.msra.mxu0 0.0
      %1293 = vmatpush.msra.mxu0 %v1276
      %1294 = vmatmul.f32.gmra.mxu0 %v1264
      %v1295 = vpop.f32.mrf.mxu0
      %v1296 = vadd.f32 %v1252, %v1295
      %1297 = vmatmul.f32.gmra.mxu0 %v1267
      %v1298 = vpop.f32.mrf.mxu0
      %v1299 = vadd.f32 %v1255, %v1298
      %1300 = vmatmul.f32.gmra.mxu0 %v1270
      %v1301 = vpop.f32.mrf.mxu0
      %v1302 = vadd.f32 %v1258, %v1301
      %1303 = vmatmul.f32.gmra.mxu0 %v1273
      %v1304 = vpop.f32.mrf.mxu0
      %v1305 = vadd.f32 %v1261, %v1304
      %1306 = vdwg.mxu0
      %v1307 = vld [vmem:[%s4 + $0x1f8] sm:$0xff]
      %v1308 = vld [vmem:[%s4 + $0x200] sm:$0xff]
      %v1309 = vld [vmem:[%s4 + $0x208] sm:$0xff]
      %v1310 = vld [vmem:[%s4 + $0x210] sm:$0xff]
      %1312 = vset.pattern.permute.xlu0 0
      %1313 = vperm.xlu0 %1312, %v1307
      %v1314 = vpop.permute.xlu0 %1313
      %1317 = vset.pattern.permute.xlu0 0
      %1318 = vperm.xlu0 %1317, %v1308
      %v1319 = vpop.permute.xlu0 %1318
      %1322 = vset.pattern.permute.xlu0 0
      %1323 = vperm.xlu0 %1322, %v1309
      %v1324 = vpop.permute.xlu0 %1323
      %1327 = vset.pattern.permute.xlu0 0
      %1328 = vperm.xlu0 %1327, %v1310
      %v1329 = vpop.permute.xlu0 %1328
      %v1331 = vadd.f32 %v1296, %v1314
      %v1332 = vadd.f32 %v1299, %v1319
      %v1333 = vadd.f32 %v1302, %v1324
      %v1334 = vadd.f32 %v1305, %v1329
      %v1335 = vmax.f32 %v1331, 0.0
      %v1336 = vmax.f32 %v1332, 0.0
      %v1337 = vmax.f32 %v1333, 0.0
      %v1338 = vmax.f32 %v1334, 0.0
      %v1339 = vld [vmem:[%s5 + $0x100] sm:$0xff]
      %v1340 = vld [vmem:[%s5 + $0x108] sm:$0xff]
      %v1341 = vld [vmem:[%s4 + $0x218] sm:$0xff]
      %v1342 = vld [vmem:[%s4 + $0x220] sm:$0xff]
      %v1343 = vld [vmem:[%s4 + $0x228] sm:$0xff]
      %v1344 = vld [vmem:[%s4 + $0x230] sm:$0xff]
      %v1346 = vsel %vm404, %v1341, 0
      %v1349 = vsel %vm404, %v1342, 0
      %v1352 = vsel %vm404, %v1343, 0
      %v1355 = vsel %vm404, %v1344, 0
      %1357 = vmatpush.msra.mxu0 0.0
      %1358 = vmatpush.msra.mxu0 0.0
      %1359 = vmatpush.msra.mxu0 0.0
      %1360 = vmatpush.msra.mxu0 0.0
      %1361 = vmatpush.msra.mxu0 0.0
      %1362 = vmatpush.msra.mxu0 0.0
      %1363 = vmatpush.msra.mxu0 0.0
      %1364 = vmatpush.msra.mxu0 0.0
      %1365 = vmatpush.msra.mxu0 0.0
      %1366 = vmatpush.msra.mxu0 0.0
      %1367 = vmatpush.msra.mxu0 0.0
      %1368 = vmatpush.msra.mxu0 0.0
      %1369 = vmatpush.msra.mxu0 %v1338
      %1370 = vmatpush.msra.mxu0 %v1337
      %1371 = vmatpush.msra.mxu0 %v1336
      %1372 = vmatpush.msra.mxu0 %v1335
      %1373 = vmatmul.f32.gmra.mxu0 %v1346
      %v1374 = vpop.f32.mrf.mxu0
      %v1375 = vadd.f32 0.0, %v1374
      %1376 = vmatmul.f32.gmra.mxu0 %v1349
      %v1377 = vpop.f32.mrf.mxu0
      %v1378 = vadd.f32 0.0, %v1377
      %1379 = vmatmul.f32.gmra.mxu0 %v1352
      %v1380 = vpop.f32.mrf.mxu0
      %v1381 = vadd.f32 0.0, %v1380
      %1382 = vmatmul.f32.gmra.mxu0 %v1355
      %v1383 = vpop.f32.mrf.mxu0
      %v1384 = vadd.f32 0.0, %v1383
      %1385 = vdwg.mxu0
      %v1386 = vld [vmem:[%s4 + $0x238] sm:$0xff]
      %v1387 = vld [vmem:[%s4 + $0x240] sm:$0xff]
      %v1388 = vld [vmem:[%s4 + $0x248] sm:$0xff]
      %v1389 = vld [vmem:[%s4 + $0x250] sm:$0xff]
      %v1391 = vsel %vm962, %v1386, 0
      %v1394 = vsel %vm962, %v1387, 0
      %v1397 = vsel %vm962, %v1388, 0
      %v1400 = vsel %vm962, %v1389, 0
      %1402 = vmatpush.msra.mxu0 0.0
      %1403 = vmatpush.msra.mxu0 0.0
      %1404 = vmatpush.msra.mxu0 0.0
      %1405 = vmatpush.msra.mxu0 0.0
      %1406 = vmatpush.msra.mxu0 0.0
      %1407 = vmatpush.msra.mxu0 0.0
      %1408 = vmatpush.msra.mxu0 0.0
      %1409 = vmatpush.msra.mxu0 0.0
      %1410 = vmatpush.msra.mxu0 0.0
      %1411 = vmatpush.msra.mxu0 0.0
      %1412 = vmatpush.msra.mxu0 0.0
      %1413 = vmatpush.msra.mxu0 0.0
      %1414 = vmatpush.msra.mxu0 0.0
      %1415 = vmatpush.msra.mxu0 0.0
      %1416 = vmatpush.msra.mxu0 %v895
      %1417 = vmatpush.msra.mxu0 %v894
      %1418 = vmatmul.f32.gmra.mxu0 %v1391
      %v1419 = vpop.f32.mrf.mxu0
      %v1420 = vadd.f32 0.0, %v1419
      %1421 = vmatmul.f32.gmra.mxu0 %v1394
      %v1422 = vpop.f32.mrf.mxu0
      %v1423 = vadd.f32 0.0, %v1422
      %1424 = vmatmul.f32.gmra.mxu0 %v1397
      %v1425 = vpop.f32.mrf.mxu0
      %v1426 = vadd.f32 0.0, %v1425
      %1427 = vmatmul.f32.gmra.mxu0 %v1400
      %v1428 = vpop.f32.mrf.mxu0
      %v1429 = vadd.f32 0.0, %v1428
      %1430 = vdwg.mxu0
      %v1432 = vsel %vm962, %v1375, 0
      %v1435 = vsel %vm962, %v1378, 0
      %v1438 = vsel %vm962, %v1381, 0
      %v1441 = vsel %vm962, %v1384, 0
      %1443 = vmatpush.msra.mxu0 0.0
      %1444 = vmatpush.msra.mxu0 0.0
      %1445 = vmatpush.msra.mxu0 0.0
      %1446 = vmatpush.msra.mxu0 0.0
      %1447 = vmatpush.msra.mxu0 0.0
      %1448 = vmatpush.msra.mxu0 0.0
      %1449 = vmatpush.msra.mxu0 0.0
      %1450 = vmatpush.msra.mxu0 0.0
      %1451 = vmatpush.msra.mxu0 0.0
      %1452 = vmatpush.msra.mxu0 0.0
      %1453 = vmatpush.msra.mxu0 0.0
      %1454 = vmatpush.msra.mxu0 0.0
      %1455 = vmatpush.msra.mxu0 0.0
      %1456 = vmatpush.msra.mxu0 0.0
      %1457 = vmatpush.msra.mxu0 %v1340
      %1458 = vmatpush.msra.mxu0 %v1339
      %1459 = vmatmul.f32.gmra.mxu0 %v1432
      %v1460 = vpop.f32.mrf.mxu0
      %v1461 = vadd.f32 %v1420, %v1460
      %1462 = vmatmul.f32.gmra.mxu0 %v1435
      %v1463 = vpop.f32.mrf.mxu0
      %v1464 = vadd.f32 %v1423, %v1463
      %1465 = vmatmul.f32.gmra.mxu0 %v1438
      %v1466 = vpop.f32.mrf.mxu0
      %v1467 = vadd.f32 %v1426, %v1466
      %1468 = vmatmul.f32.gmra.mxu0 %v1441
      %v1469 = vpop.f32.mrf.mxu0
      %v1470 = vadd.f32 %v1429, %v1469
      %1471 = vdwg.mxu0
      %v1472 = vld [vmem:[%s4 + $0x258] sm:$0xff]
      %v1473 = vld [vmem:[%s4 + $0x260] sm:$0xff]
      %v1474 = vld [vmem:[%s4 + $0x268] sm:$0xff]
      %v1475 = vld [vmem:[%s4 + $0x270] sm:$0xff]
      %1477 = vset.pattern.permute.xlu0 0
      %1478 = vperm.xlu0 %1477, %v1472
      %v1479 = vpop.permute.xlu0 %1478
      %1482 = vset.pattern.permute.xlu0 0
      %1483 = vperm.xlu0 %1482, %v1473
      %v1484 = vpop.permute.xlu0 %1483
      %1487 = vset.pattern.permute.xlu0 0
      %1488 = vperm.xlu0 %1487, %v1474
      %v1489 = vpop.permute.xlu0 %1488
      %1492 = vset.pattern.permute.xlu0 0
      %1493 = vperm.xlu0 %1492, %v1475
      %v1494 = vpop.permute.xlu0 %1493
      %v1496 = vadd.f32 %v1461, %v1479
      %v1497 = vadd.f32 %v1464, %v1484
      %v1498 = vadd.f32 %v1467, %v1489
      %v1499 = vadd.f32 %v1470, %v1494
      %v1500 = vmax.f32 %v1496, 0.0
      %v1501 = vmax.f32 %v1497, 0.0
      %v1502 = vmax.f32 %v1498, 0.0
      %v1503 = vmax.f32 %v1499, 0.0
      %v1504 = vld [vmem:[%s6] sm:$0xff]
      %v1505 = vld [vmem:[%s6 + $0x8] sm:$0xff]
      %v1506 = vld [vmem:[%s6 + $0x10] sm:$0xff]
      %v1507 = vld [vmem:[%s6 + $0x18] sm:$0xff]
      %v1508 = vld [vmem:[%s6 + $0x20] sm:$0xff]
      %v1509 = vld [vmem:[%s6 + $0x28] sm:$0xff]
      %v1510 = vld [vmem:[%s6 + $0x30] sm:$0xff]
      %v1511 = vld [vmem:[%s6 + $0x38] sm:$0xff]
      %v1512 = vld [vmem:[%s6 + $0x40] sm:$0xff]
      %v1513 = vld [vmem:[%s6 + $0x48] sm:$0xff]
      %v1514 = vld [vmem:[%s6 + $0x50] sm:$0xff]
      %v1515 = vld [vmem:[%s6 + $0x58] sm:$0xff]
      %v1516 = vld [vmem:[%s6 + $0x60] sm:$0xff]
      %v1517 = vld [vmem:[%s6 + $0x68] sm:$0xff]
      %v1518 = vld [vmem:[%s6 + $0x70] sm:$0xff]
      %v1519 = vld [vmem:[%s6 + $0x78] sm:$0xff]
      %v1520 = vld [vmem:[%s4 + $0x278] sm:$0xff]
      %v1521 = vld [vmem:[%s4 + $0x280] sm:$0xff]
      %v1522 = vld [vmem:[%s4 + $0x288] sm:$0xff]
      %v1523 = vld [vmem:[%s4 + $0x290] sm:$0xff]
      %v1525 = vsel %vm404, %v1520, 0
      %v1528 = vsel %vm404, %v1521, 0
      %v1531 = vsel %vm404, %v1522, 0
      %v1534 = vsel %vm404, %v1523, 0
      %1536 = vmatpush.msra.mxu0 0.0
      %1537 = vmatpush.msra.mxu0 0.0
      %1538 = vmatpush.msra.mxu0 0.0
      %1539 = vmatpush.msra.mxu0 0.0
      %1540 = vmatpush.msra.mxu0 0.0
      %1541 = vmatpush.msra.mxu0 0.0
      %1542 = vmatpush.msra.mxu0 0.0
      %1543 = vmatpush.msra.mxu0 0.0
      %1544 = vmatpush.msra.mxu0 0.0
      %1545 = vmatpush.msra.mxu0 0.0
      %1546 = vmatpush.msra.mxu0 0.0
      %1547 = vmatpush.msra.mxu0 0.0
      %1548 = vmatpush.msra.mxu0 %v1503
      %1549 = vmatpush.msra.mxu0 %v1502
      %1550 = vmatpush.msra.mxu0 %v1501
      %1551 = vmatpush.msra.mxu0 %v1500
      %1552 = vmatmul.f32.gmra.mxu0 %v1525
      %v1553 = vpop.f32.mrf.mxu0
      %v1554 = vadd.f32 0.0, %v1553
      %1555 = vmatmul.f32.gmra.mxu0 %v1528
      %v1556 = vpop.f32.mrf.mxu0
      %v1557 = vadd.f32 0.0, %v1556
      %1558 = vmatmul.f32.gmra.mxu0 %v1531
      %v1559 = vpop.f32.mrf.mxu0
      %v1560 = vadd.f32 0.0, %v1559
      %1561 = vmatmul.f32.gmra.mxu0 %v1534
      %v1562 = vpop.f32.mrf.mxu0
      %v1563 = vadd.f32 0.0, %v1562
      %1564 = vdwg.mxu0
      %v1565 = vld [vmem:[%s4 + $0x298] sm:$0xff]
      %v1566 = vld [vmem:[%s4 + $0x2a0] sm:$0xff]
      %v1567 = vld [vmem:[%s4 + $0x2a8] sm:$0xff]
      %v1568 = vld [vmem:[%s4 + $0x2b0] sm:$0xff]
      %v1570 = vsel %vm350, %v1565, 0
      %v1573 = vsel %vm350, %v1566, 0
      %v1576 = vsel %vm350, %v1567, 0
      %v1579 = vsel %vm350, %v1568, 0
      %1581 = vmatpush.msra.mxu0 0.0
      %1582 = vmatpush.msra.mxu0 0.0
      %1583 = vmatpush.msra.mxu0 0.0
      %1584 = vmatpush.msra.mxu0 0.0
      %1585 = vmatpush.msra.mxu0 0.0
      %1586 = vmatpush.msra.mxu0 0.0
      %1587 = vmatpush.msra.mxu0 0.0
      %1588 = vmatpush.msra.mxu0 0.0
      %1589 = vmatpush.msra.mxu0 0.0
      %1590 = vmatpush.msra.mxu0 0.0
      %1591 = vmatpush.msra.mxu0 0.0
      %1592 = vmatpush.msra.mxu0 0.0
      %1593 = vmatpush.msra.mxu0 0.0
      %1594 = vmatpush.msra.mxu0 0.0
      %1595 = vmatpush.msra.mxu0 0.0
      %1596 = vmatpush.msra.mxu0 %v765
      %1597 = vmatmul.f32.gmra.mxu0 %v1570
      %v1598 = vpop.f32.mrf.mxu0
      %v1599 = vadd.f32 0.0, %v1598
      %1600 = vmatmul.f32.gmra.mxu0 %v1573
      %v1601 = vpop.f32.mrf.mxu0
      %v1602 = vadd.f32 0.0, %v1601
      %1603 = vmatmul.f32.gmra.mxu0 %v1576
      %v1604 = vpop.f32.mrf.mxu0
      %v1605 = vadd.f32 0.0, %v1604
      %1606 = vmatmul.f32.gmra.mxu0 %v1579
      %v1607 = vpop.f32.mrf.mxu0
      %v1608 = vadd.f32 0.0, %v1607
      %1609 = vdwg.mxu0
      %1610 = vmatpush.msra.mxu0 0.0
      %1611 = vmatpush.msra.mxu0 0.0
      %1612 = vmatpush.msra.mxu0 0.0
      %1613 = vmatpush.msra.mxu0 0.0
      %1614 = vmatpush.msra.mxu0 0.0
      %1615 = vmatpush.msra.mxu0 0.0
      %1616 = vmatpush.msra.mxu0 0.0
      %1617 = vmatpush.msra.mxu0 0.0
      %1618 = vmatpush.msra.mxu0 0.0
      %1619 = vmatpush.msra.mxu0 0.0
      %1620 = vmatpush.msra.mxu0 0.0
      %1621 = vmatpush.msra.mxu0 0.0
      %1622 = vmatpush.msra.mxu0 0.0
      %1623 = vmatpush.msra.mxu0 0.0
      %1624 = vmatpush.msra.mxu0 0.0
      %1625 = vmatpush.msra.mxu0 %v766
      %1626 = vmatmul.f32.gmra.mxu0 %v1570
      %v1627 = vpop.f32.mrf.mxu0
      %v1628 = vadd.f32 0.0, %v1627
      %1629 = vmatmul.f32.gmra.mxu0 %v1573
      %v1630 = vpop.f32.mrf.mxu0
      %v1631 = vadd.f32 0.0, %v1630
      %1632 = vmatmul.f32.gmra.mxu0 %v1576
      %v1633 = vpop.f32.mrf.mxu0
      %v1634 = vadd.f32 0.0, %v1633
      %1635 = vmatmul.f32.gmra.mxu0 %v1579
      %v1636 = vpop.f32.mrf.mxu0
      %v1637 = vadd.f32 0.0, %v1636
      %1638 = vdwg.mxu0
      %v1640 = vsel %vm904, %v1554, 0
      %v1643 = vsel %vm904, %v1557, 0
      %v1646 = vsel %vm904, %v1560, 0
      %v1649 = vsel %vm904, %v1563, 0
      %1651 = vmatpush.msra.mxu0 0.0
      %1652 = vmatpush.msra.mxu0 0.0
      %1653 = vmatpush.msra.mxu0 0.0
      %1654 = vmatpush.msra.mxu0 0.0
      %1655 = vmatpush.msra.mxu0 0.0
      %1656 = vmatpush.msra.mxu0 0.0
      %1657 = vmatpush.msra.mxu0 0.0
      %1658 = vmatpush.msra.mxu0 0.0
      %1659 = vmatpush.msra.mxu0 %v1518
      %1660 = vmatpush.msra.mxu0 %v1516
      %1661 = vmatpush.msra.mxu0 %v1514
      %1662 = vmatpush.msra.mxu0 %v1512
      %1663 = vmatpush.msra.mxu0 %v1510
      %1664 = vmatpush.msra.mxu0 %v1508
      %1665 = vmatpush.msra.mxu0 %v1506
      %1666 = vmatpush.msra.mxu0 %v1504
      %1667 = vmatmul.f32.gmra.mxu0 %v1640
      %v1668 = vpop.f32.mrf.mxu0
      %v1669 = vadd.f32 %v1599, %v1668
      %1670 = vmatmul.f32.gmra.mxu0 %v1643
      %v1671 = vpop.f32.mrf.mxu0
      %v1672 = vadd.f32 %v1602, %v1671
      %1673 = vmatmul.f32.gmra.mxu0 %v1646
      %v1674 = vpop.f32.mrf.mxu0
      %v1675 = vadd.f32 %v1605, %v1674
      %1676 = vmatmul.f32.gmra.mxu0 %v1649
      %v1677 = vpop.f32.mrf.mxu0
      %v1678 = vadd.f32 %v1608, %v1677
      %1679 = vdwg.mxu0
      %1680 = vmatpush.msra.mxu0 0.0
      %1681 = vmatpush.msra.mxu0 0.0
      %1682 = vmatpush.msra.mxu0 0.0
      %1683 = vmatpush.msra.mxu0 0.0
      %1684 = vmatpush.msra.mxu0 0.0
      %1685 = vmatpush.msra.mxu0 0.0
      %1686 = vmatpush.msra.mxu0 0.0
      %1687 = vmatpush.msra.mxu0 0.0
      %1688 = vmatpush.msra.mxu0 %v1519
      %1689 = vmatpush.msra.mxu0 %v1517
      %1690 = vmatpush.msra.mxu0 %v1515
      %1691 = vmatpush.msra.mxu0 %v1513
      %1692 = vmatpush.msra.mxu0 %v1511
      %1693 = vmatpush.msra.mxu0 %v1509
      %1694 = vmatpush.msra.mxu0 %v1507
      %1695 = vmatpush.msra.mxu0 %v1505
      %1696 = vmatmul.f32.gmra.mxu0 %v1640
      %v1697 = vpop.f32.mrf.mxu0
      %v1698 = vadd.f32 %v1628, %v1697
      %1699 = vmatmul.f32.gmra.mxu0 %v1643
      %v1700 = vpop.f32.mrf.mxu0
      %v1701 = vadd.f32 %v1631, %v1700
      %1702 = vmatmul.f32.gmra.mxu0 %v1646
      %v1703 = vpop.f32.mrf.mxu0
      %v1704 = vadd.f32 %v1634, %v1703
      %1705 = vmatmul.f32.gmra.mxu0 %v1649
      %v1706 = vpop.f32.mrf.mxu0
      %v1707 = vadd.f32 %v1637, %v1706
      %1708 = vdwg.mxu0
      %v1709 = vld [vmem:[%s4 + $0x2b8] sm:$0xff]
      %v1710 = vld [vmem:[%s4 + $0x2c0] sm:$0xff]
      %v1711 = vld [vmem:[%s4 + $0x2c8] sm:$0xff]
      %v1712 = vld [vmem:[%s4 + $0x2d0] sm:$0xff]
      %1714 = vset.pattern.permute.xlu0 0
      %1715 = vperm.xlu0 %1714, %v1709
      %v1716 = vpop.permute.xlu0 %1715
      %1719 = vset.pattern.permute.xlu0 0
      %1720 = vperm.xlu0 %1719, %v1710
      %v1721 = vpop.permute.xlu0 %1720
      %1724 = vset.pattern.permute.xlu0 0
      %1725 = vperm.xlu0 %1724, %v1711
      %v1726 = vpop.permute.xlu0 %1725
      %1729 = vset.pattern.permute.xlu0 0
      %1730 = vperm.xlu0 %1729, %v1712
      %v1731 = vpop.permute.xlu0 %1730
      %v1733 = vadd.f32 %v1669, %v1716
      %v1734 = vadd.f32 %v1698, %v1716
      %v1735 = vadd.f32 %v1672, %v1721
      %v1736 = vadd.f32 %v1701, %v1721
      %v1737 = vadd.f32 %v1675, %v1726
      %v1738 = vadd.f32 %v1704, %v1726
      %v1739 = vadd.f32 %v1678, %v1731
      %v1740 = vadd.f32 %v1707, %v1731
      %v1741 = vmax.f32 %v1733, 0.0
      %v1742 = vmax.f32 %v1734, 0.0
      %v1743 = vmax.f32 %v1735, 0.0
      %v1744 = vmax.f32 %v1736, 0.0
      %v1745 = vmax.f32 %v1737, 0.0
      %v1746 = vmax.f32 %v1738, 0.0
      %v1747 = vmax.f32 %v1739, 0.0
      %v1748 = vmax.f32 %v1740, 0.0
      %v1749 = vld [vmem:[%s4 + $0x2d8] sm:$0x3]
      %v1750 = vld [vmem:[%s4 + $0x2e0] sm:$0x3]
      %1752 = vset.pattern.permute.xlu0 0
      %1753 = vperm.xlu0 %1752, %v1750
      %v1754 = vpop.permute.xlu0 %1753
      %v1757 = vsel %vm404, %v1749, 0
      %1759 = vmatpush.msra.mxu0 0.0
      %1760 = vmatpush.msra.mxu0 0.0
      %1761 = vmatpush.msra.mxu0 0.0
      %1762 = vmatpush.msra.mxu0 0.0
      %1763 = vmatpush.msra.mxu0 0.0
      %1764 = vmatpush.msra.mxu0 0.0
      %1765 = vmatpush.msra.mxu0 0.0
      %1766 = vmatpush.msra.mxu0 0.0
      %1767 = vmatpush.msra.mxu0 0.0
      %1768 = vmatpush.msra.mxu0 0.0
      %1769 = vmatpush.msra.mxu0 0.0
      %1770 = vmatpush.msra.mxu0 0.0
      %1771 = vmatpush.msra.mxu0 %v1747
      %1772 = vmatpush.msra.mxu0 %v1745
      %1773 = vmatpush.msra.mxu0 %v1743
      %1774 = vmatpush.msra.mxu0 %v1741
      %1775 = vmatmul.f32.gmra.mxu0 %v1757
      %v1776 = vpop.f32.mrf.mxu0
      %v1777 = vadd.f32 %v1754, %v1776
      %1778 = vdwg.mxu0
      %1779 = vmatpush.msra.mxu0 0.0
      %1780 = vmatpush.msra.mxu0 0.0
      %1781 = vmatpush.msra.mxu0 0.0
      %1782 = vmatpush.msra.mxu0 0.0
      %1783 = vmatpush.msra.mxu0 0.0
      %1784 = vmatpush.msra.mxu0 0.0
      %1785 = vmatpush.msra.mxu0 0.0
      %1786 = vmatpush.msra.mxu0 0.0
      %1787 = vmatpush.msra.mxu0 0.0
      %1788 = vmatpush.msra.mxu0 0.0
      %1789 = vmatpush.msra.mxu0 0.0
      %1790 = vmatpush.msra.mxu0 0.0
      %1791 = vmatpush.msra.mxu0 %v1748
      %1792 = vmatpush.msra.mxu0 %v1746
      %1793 = vmatpush.msra.mxu0 %v1744
      %1794 = vmatpush.msra.mxu0 %v1742
      %1795 = vmatmul.f32.gmra.mxu0 %v1757
      %v1796 = vpop.f32.mrf.mxu0
      %v1797 = vadd.f32 %v1754, %v1796
      %1798 = vdwg.mxu0
      %v1799 = vadd.f32 %v1741, %v1742
      %1800 = vadd.xlane.f32.xlu0 %v1799
      %v1801 = vpop.xlane.xlu0 %1800
      %v1802 = vadd.f32 %v1743, %v1744
      %1803 = vadd.xlane.f32.xlu0 %v1802
      %v1804 = vpop.xlane.xlu0 %1803
      %v1805 = vadd.f32 %v1745, %v1746
      %1806 = vadd.xlane.f32.xlu0 %v1805
      %v1807 = vpop.xlane.xlu0 %1806
      %v1808 = vadd.f32 %v1747, %v1748
      %1809 = vadd.xlane.f32.xlu0 %v1808
      %v1810 = vpop.xlane.xlu0 %1809
      %v1811 = vrcp.pop 256.0
      %v1812 = vmul.f32 256.0, %v1811
      %v1813 = vsub.f32 1.0, %v1812
      %v1814 = vmul.f32 %v1811, %v1813
      %v1815 = vadd.f32 %v1811, %v1814
      %vm1816 = vweird.f32 %v1811
      %v1817 = vsel %vm1816, %v1811, %v1815
      %v1818 = vmul.f32 %v1801, %v1817
      %v1819 = vmul.f32 %v1804, %v1817
      %v1820 = vmul.f32 %v1807, %v1817
      %v1821 = vmul.f32 %v1810, %v1817
      %v1822 = vld [vmem:[%s4 + $0x2e8] sm:$0xff]
      %v1823 = vld [vmem:[%s4 + $0x2f0] sm:$0xff]
      %v1824 = vld [vmem:[%s4 + $0x2f8] sm:$0xff]
      %v1825 = vld [vmem:[%s4 + $0x300] sm:$0xff]
      %v1826 = vmul.f32 %v1822, %v1818
      %v1827 = vmul.f32 %v1823, %v1819
      %v1828 = vmul.f32 %v1824, %v1820
      %v1829 = vmul.f32 %v1825, %v1821
      %v1830 = vsel %vm404, %v1826, 0.0
      %v1831 = vsel %vm404, %v1827, 0.0
      %v1832 = vadd.f32 %v1830, %v1831
      %v1833 = vsel %vm404, %v1828, 0.0
      %v1834 = vadd.f32 %v1832, %v1833
      %v1835 = vsel %vm404, %v1829, 0.0
      %v1836 = vadd.f32 %v1834, %v1835
      %v1837 = vrot.slane %v1836, 4
      %v1838 = vadd.f32 %v1836, %v1837
      %v1839 = vrot.slane %v1838, 2
      %v1840 = vadd.f32 %v1838, %v1839
      %v1841 = vrot.slane %v1840, 1
      %v1842 = vadd.f32 %v1840, %v1841
      %v1843 = vld [vmem:[%s4 + $0x308] sm:$0x1]
      %v1844 = vadd.f32 %v1842, %v1843
      %v1845 = vld [vmem:[%s4 + $0x310] sm:$0xff]
      %v1846 = vld [vmem:[%s4 + $0x318] sm:$0xff]
      %v1847 = vld [vmem:[%s4 + $0x320] sm:$0xff]
      %v1848 = vld [vmem:[%s4 + $0x328] sm:$0xff]
      %v1849 = vld [vmem:[%s327] sm:$0xff]
      %v1850 = vld [vmem:[%s327 + $0x8] sm:$0xff]
      %v1851 = vld [vmem:[%s327 + $0x10] sm:$0xff]
      %v1852 = vld [vmem:[%s327 + $0x18] sm:$0xff]
      %1854 = vset.pattern.permute.xlu0 0
      %1855 = vperm.xlu0 %1854, %v1849
      %v1856 = vpop.permute.xlu0 %1855
      %1859 = vset.pattern.permute.xlu0 0
      %1860 = vperm.xlu0 %1859, %v1850
      %v1861 = vpop.permute.xlu0 %1860
      %1864 = vset.pattern.permute.xlu0 0
      %1865 = vperm.xlu0 %1864, %v1851
      %v1866 = vpop.permute.xlu0 %1865
      %1869 = vset.pattern.permute.xlu0 0
      %1870 = vperm.xlu0 %1869, %v1852
      %v1871 = vpop.permute.xlu0 %1870
      %v1873 = vmul.f32 %v1845, %v1856
      %v1874 = vmul.f32 %v1846, %v1861
      %v1875 = vmul.f32 %v1847, %v1866
      %v1876 = vmul.f32 %v1848, %v1871
      %v1877 = vsel %vm404, %v1873, 0.0
      %v1878 = vsel %vm404, %v1874, 0.0
      %v1879 = vadd.f32 %v1877, %v1878
      %v1880 = vsel %vm404, %v1875, 0.0
      %v1881 = vadd.f32 %v1879, %v1880
      %v1882 = vsel %vm404, %v1876, 0.0
      %v1883 = vadd.f32 %v1881, %v1882
      %v1884 = vrot.slane %v1883, 4
      %v1885 = vadd.f32 %v1883, %v1884
      %v1886 = vrot.slane %v1885, 2
      %v1887 = vadd.f32 %v1885, %v1886
      %v1888 = vrot.slane %v1887, 1
      %v1889 = vadd.f32 %v1887, %v1888
      %v1890 = vld [vmem:[%s4 + $0x330] sm:$0x1]
      %v1891 = vadd.f32 %v1889, %v1890
      %v1892 = vsub.f32 %v1844, %v1891
      %v1895 = vrot.slane %v1797, 4
      %v1896 = vsel %vm713, %v1777, %v1895
      %1898 = vst [vmem:[%s332] sm:$0x33] %v1896
      %v1899 = vlaneseq
      %vm1900 = vcmp.ge.s32.totalorder %v1899, 0
      %vm1901 = vcmp.lt.s32.totalorder %v1899, 256
      %vm1902 = vmand %vm1900, %vm1901
      %s1903 = scalar_lea.vmem %s332, 2
      %1904 = vst.msk [vmem:[%s1903] ss:$4 sm:$0x3] %vm1902, 0.0
      %vm1905 = vcmask 253952
      %1906 = vst.msk [vmem:[%s332 + $0x2] sm:$0x1] %vm1905, %v1892
      %p1907 = scmp.lt.s32.totalorder %s18, 1
      %s1908 = scalar_select %p1907, %s18, 1
      %s1909 = smul.addr %s1908, 2
      %s1910 = smul.addr %s1909, 4
      %s1911 = scalar_lea.vmem %s7, %s1910
      // Predicated region
      $region49: #{lavt_simple_decode.1} parent=47 // pred_check
        %p1912 = pneg %p203
      $region50: #{lavt_simple_decode.1} parent=47 // pred_check_branch
        %1914 = sbr.rel (%p1912) target = $region52
      $region51: #{lavt_simple_decode.1} parent=47 // pred_region
        _
      $region52: #{lavt_simple_decode.1} parent=47 // pred_fallthru
        _
    $region48: #{lavt_simple_decode.1} parent=5 // pred_fallthru
      _
    %p1915 = scmp.le.s32.totalorder 2, %s13
    // Predicated region
    $region53: #{lavt_simple_decode.1} parent=5 // pred_check
      %p1916 = pneg %p1915
    $region54: #{lavt_simple_decode.1} parent=5 // pred_check_branch
      %1918 = sbr.rel (%p1916) target = $region56
    $region55: #{lavt_simple_decode.1} parent=5 // pred_region
      %s1919 = ssub.s32 %s13, 2
      // Predicated region
      $region57: #{lavt_simple_decode.1} parent=55 // pred_check
        %p1920 = pneg %p209
      $region58: #{lavt_simple_decode.1} parent=55 // pred_check_branch
        %1922 = sbr.rel (%p1920) target = $region60
      $region59: #{lavt_simple_decode.1} parent=55 // pred_region
        %p1923 = scmp.lt.s32.totalorder %s19, 1
        %s1924 = scalar_select %p1923, %s19, 1
        %s1925 = smul.addr %s1924, 2
        %s1926 = smul.addr %s1925, 4
        %s1927 = scalar_lea.vmem %s7, %s1926
      $region60: #{lavt_simple_decode.1} parent=55 // pred_fallthru
        _
    $region56: #{lavt_simple_decode.1} parent=5 // pred_fallthru
      _
  $region6: #{lavt_simple_decode.1} parent=0 // loop_footer
    %s17 = sadd.s32 1, %s13
  $region7: #{lavt_simple_decode.1} parent=0 // loop_footer_branch
    %12 = sbr.rel target = $region3
  $region8: #{lavt_simple_decode.1} parent=0 // loop_exit
    _

</llo_original>
